<compile_context>
chip_gen: v7x
topology: tpu7x:2x2x1
jax: 0.10.0
libtpu: 0.0.40
codegen_flags: <defaults>
</compile_context>

<pallas_src>
import functools
import math

import jax
import jax.numpy as jnp
from jax.experimental import pallas as pl
from jax.experimental.pallas import tpu as pltpu

_VMEM_LIMIT = 32 * 1024 * 1024


def _round_up(x, m):
    return (x + m - 1) // m * m


@functools.lru_cache(maxsize=None)
def _tiles():
    """(TM, TN, TK) matmul tiles per TPU generation (narrower tiles on v5e)."""
    try:
        kind = jax.devices()[0].device_kind.lower()
    except Exception:  # pragma: no cover - CPU fallback
        kind = ""
    if ("v5e" in kind) or ("v5 lite" in kind) or ("v5litepod" in kind):
        return 128, 128, 512
    return 256, 256, 512


# ----------------------------------------------------------------------------
# Pallas kernels
# ----------------------------------------------------------------------------
def _matmul_bias_kernel(x_ref, w_ref, b_ref, o_ref, acc_ref, *, relu):
    # x: (tm, tk) bf16, w: (tk, tn) bf16, b: (1, tn) f32, o: (tm, tn)
    @pl.when(pl.program_id(2) == 0)
    def _():
        acc_ref[...] = jnp.zeros_like(acc_ref)

    acc_ref[...] += jnp.dot(x_ref[...], w_ref[...],
                            preferred_element_type=jnp.float32)

    @pl.when(pl.program_id(2) == pl.num_programs(2) - 1)
    def _():
        y = acc_ref[...] + b_ref[...]
        if relu:
            y = jnp.maximum(y, 0.0)
        o_ref[...] = y.astype(o_ref.dtype)


def _matmul_bias_add_ln_kernel(x_ref, w_ref, b_ref, r_ref, g_ref, bt_ref,
                               o_ref, acc_ref, *, eps, d):
    # Fused: (x @ W + b + resid) followed by torch-style LayerNorm
    #   mean over last dim, *unbiased* std, out = gamma*(y-mean)/(std+eps)+beta
    @pl.when(pl.program_id(1) == 0)
    def _():
        acc_ref[...] = jnp.zeros_like(acc_ref)

    acc_ref[...] += jnp.dot(x_ref[...], w_ref[...],
                            preferred_element_type=jnp.float32)

    @pl.when(pl.program_id(1) == pl.num_programs(1) - 1)
    def _():
        y = acc_ref[...] + b_ref[...] + r_ref[...]
        mean = jnp.mean(y, axis=-1, keepdims=True)
        c = y - mean
        var = jnp.sum(c * c, axis=-1, keepdims=True) * (1.0 / (d - 1))
        std = jnp.sqrt(var)
        out = c / (std + eps)                       # exact div: LN precision matters
        o_ref[...] = (g_ref[...] * out + bt_ref[...]).astype(o_ref.dtype)


def _mha_kernel(q_ref, k_ref, v_ref, m_ref, o_ref, *, h, dk):
    # q: (H, tq, dk) bf16 (1/sqrt(dk) pre-folded into Wq); k/v: (H, Sk, dk) bf16
    # m: (tq, Sk) additive f32 (0 keep / -1e9 masked); o: (tq, H*dk)
    q = q_ref[...]
    k = k_ref[...]
    v = v_ref[...]
    # All heads' scores in one head-batched MXU pass.
    s = jnp.einsum("hqd,hkd->hqk", q, k,
                   preferred_element_type=jnp.float32)          # (H, tq, Sk)
    s = s + m_ref[...]                                          # broadcast over heads
    s = s - jnp.max(s, axis=-1, keepdims=True)
    p = jnp.exp(s)
    p = p * pl.reciprocal(jnp.sum(p, axis=-1, keepdims=True), approx=True)
    # All heads' contexts in one head-batched MXU pass (bf16 probabilities).
    ctx = jnp.einsum("hqk,hkd->hqd", p.astype(v.dtype), v,
                     preferred_element_type=jnp.float32)        # (H, tq, dk) f32
    if h == 1:
        o_ref[...] = ctx[0].astype(o_ref.dtype)
    elif dk % 128 == 0:
        # per-head stores are already lane-dense
        for i in range(h):
            o_ref[:, i * dk:(i + 1) * dk] = ctx[i].astype(o_ref.dtype)
    else:
        # merge heads in-register and issue a single lane-dense store
        o = jnp.concatenate([ctx[i] for i in range(h)], axis=-1)  # (tq, H*dk)
        o_ref[...] = o.astype(o_ref.dtype)


# ----------------------------------------------------------------------------
# Pallas wrappers (operate on pre-padded, pre-cast bf16 weights)
# ----------------------------------------------------------------------------
def linear_apply(x, lp, *, relu=False, out_dtype=jnp.float32):
    """x: (M, K) -> (M, Np).  lp['w']: (Kp, Np) bf16 pre-padded, lp['b']: (1, Np) f32."""
    TM, TN, TK = _tiles()
    M, K = x.shape
    Kp, Np = lp["w"].shape
    tm = min(TM, _round_up(M, 8))
    Mp = _round_up(M, tm)
    tn = min(TN, Np)
    tk = Kp if (Kp <= TK or Kp % TK != 0) else TK
    xp = x.astype(jnp.bfloat16)
    if (Mp, Kp) != (M, K):
        xp = jnp.pad(xp, ((0, Mp - M), (0, Kp - K)))
    grid = (Mp // tm, Np // tn, Kp // tk)
    out = pl.pallas_call(
        functools.partial(_matmul_bias_kernel, relu=relu),
        out_shape=jax.ShapeDtypeStruct((Mp, Np), out_dtype),
        grid=grid,
        in_specs=[
            pl.BlockSpec((tm, tk), lambda i, j, k: (i, k)),
            pl.BlockSpec((tk, tn), lambda i, j, k: (k, j)),
            pl.BlockSpec((1, tn), lambda i, j, k: (0, j)),
        ],
        out_specs=pl.BlockSpec((tm, tn), lambda i, j, k: (i, j)),
        scratch_shapes=[pltpu.VMEM((tm, tn), jnp.float32)],
        compiler_params=pltpu.CompilerParams(
            dimension_semantics=("parallel", "parallel", "arbitrary"),
            vmem_limit_bytes=_VMEM_LIMIT),
        cost_estimate=pl.CostEstimate(
            flops=2 * Mp * Np * Kp, transcendentals=0,
            bytes_accessed=2 * (Mp * Kp + Kp * Np) + 4 * Mp * Np),
    )(xp, lp["w"], lp["b"])
    if Mp != M:
        out = out[:M]
    return out


def linear_ln_apply(x, lp, resid):
    """(x @ W + b + resid) -> torch-style LayerNorm.  N kept un-tiled (full row)."""
    TM, TN, TK = _tiles()
    M, K = x.shape
    Kp, N = lp["w"].shape
    tm = min(128, min(TM, _round_up(M, 8)))      # cap tm: un-tiled-N epilogue VMEM budget
    Mp = _round_up(M, tm)
    tk = Kp if (Kp <= TK or Kp % TK != 0) else TK
    xp = x.astype(jnp.bfloat16)
    if (Mp, Kp) != (M, K):
        xp = jnp.pad(xp, ((0, Mp - M), (0, Kp - K)))
    rp = resid if Mp == M else jnp.pad(resid, ((0, Mp - M), (0, 0)))
    grid = (Mp // tm, Kp // tk)
    out = pl.pallas_call(
        functools.partial(_matmul_bias_add_ln_kernel, eps=1e-12, d=N),
        out_shape=jax.ShapeDtypeStruct((Mp, N), jnp.float32),
        grid=grid,
        in_specs=[
            pl.BlockSpec((tm, tk), lambda i, k: (i, k)),
            pl.BlockSpec((tk, N), lambda i, k: (k, 0)),
            pl.BlockSpec((1, N), lambda i, k: (0, 0)),
            pl.BlockSpec((tm, N), lambda i, k: (i, 0)),
            pl.BlockSpec((1, N), lambda i, k: (0, 0)),
            pl.BlockSpec((1, N), lambda i, k: (0, 0)),
        ],
        out_specs=pl.BlockSpec((tm, N), lambda i, k: (i, 0)),
        scratch_shapes=[pltpu.VMEM((tm, N), jnp.float32)],
        compiler_params=pltpu.CompilerParams(
            dimension_semantics=("parallel", "arbitrary"),
            vmem_limit_bytes=_VMEM_LIMIT),
        cost_estimate=pl.CostEstimate(
            flops=2 * Mp * N * Kp + 10 * Mp * N, transcendentals=Mp,
            bytes_accessed=2 * (Mp * Kp + Kp * N) + 12 * Mp * N),
    )(xp, lp["w"], lp["b"], rp, lp["g"], lp["bt"])
    if Mp != M:
        out = out[:M]
    return out


def attention(q_h, k_h, v_h, addmask, *, out_dtype=jnp.bfloat16):
    """q_h: (B, H, Sq, dk) bf16; k_h/v_h: (B, H, Sk, dk) bf16; addmask: (B, Sq, Sk) f32.
    Returns head-merged context (B, Sq, H*dk)."""
    B, H, Sq, dk = q_h.shape
    Sk = k_h.shape[2]
    d_model = H * dk
    # Query tiling (flash-style block over q; full K/V per block so softmax is exact).
    tq = Sq if (Sq <= 256 or Sq % 256 != 0) else 256
    grid = (B, Sq // tq)
    return pl.pallas_call(
        functools.partial(_mha_kernel, h=H, dk=dk),
        out_shape=jax.ShapeDtypeStruct((B, Sq, d_model), out_dtype),
        grid=grid,
        in_specs=[
            pl.BlockSpec((None, H, tq, dk), lambda b, qi: (b, 0, qi, 0)),
            pl.BlockSpec((None, H, Sk, dk), lambda b, qi: (b, 0, 0, 0)),
            pl.BlockSpec((None, H, Sk, dk), lambda b, qi: (b, 0, 0, 0)),
            pl.BlockSpec((None, tq, Sk), lambda b, qi: (b, qi, 0)),
        ],
        out_specs=pl.BlockSpec((None, tq, d_model), lambda b, qi: (b, qi, 0)),
        compiler_params=pltpu.CompilerParams(
            dimension_semantics=("parallel", "parallel"),
            vmem_limit_bytes=_VMEM_LIMIT),
        cost_estimate=pl.CostEstimate(
            flops=4 * B * H * Sq * Sk * dk,
            transcendentals=B * H * Sq * Sk,
            bytes_accessed=2 * (q_h.size + k_h.size + v_h.size + B * Sq * d_model)
                           + 4 * addmask.size),
    )(q_h, k_h, v_h, addmask)


# ----------------------------------------------------------------------------
# Model (plain-JAX orchestration calling the Pallas kernels)
# ----------------------------------------------------------------------------
def self_mha_block(x, addmask, lp, h, d_model):
    B, S, De = x.shape
    dk = d_model // h
    x_flat = x.reshape(B * S, De)
    qkv = linear_apply(x_flat, lp["qkv"], out_dtype=jnp.bfloat16)
    qkv = qkv[:, :3 * d_model].reshape(B, S, 3, h, dk).transpose(2, 0, 3, 1, 4)
    ctx = attention(qkv[0], qkv[1], qkv[2], addmask)             # (B, S, d_model) bf16
    out = linear_ln_apply(ctx.reshape(B * S, d_model), lp["self_out"], x_flat)
    return out.reshape(B, S, De)


def cross_mha_block(x, enc_out, addmask, lp, h, d_model):
    B, Sq, De = x.shape
    Sk = enc_out.shape[1]
    dk = d_model // h
    x_flat = x.reshape(B * Sq, De)
    q = linear_apply(x_flat, lp["q"], out_dtype=jnp.bfloat16)
    q = q[:, :d_model].reshape(B, Sq, h, dk).transpose(0, 2, 1, 3)
    kv = linear_apply(enc_out.reshape(B * Sk, -1), lp["kv"], out_dtype=jnp.bfloat16)
    kv = kv[:, :2 * d_model].reshape(B, Sk, 2, h, dk).transpose(2, 0, 3, 1, 4)
    ctx = attention(q, kv[0], kv[1], addmask)                    # (B, Sq, d_model) bf16
    out = linear_ln_apply(ctx.reshape(B * Sq, d_model), lp["cross_out"], x_flat)
    return out.reshape(B, Sq, De)


def decoder_layer(x, addmask, enc_out, enc_addmask, lp, h, d_model):
    B, S, D = x.shape
    # 1) masked self-attention + add&norm (LN fused into the output projection)
    x = self_mha_block(x, addmask, lp, h, d_model)
    # 2) encoder-decoder attention + add&norm
    x = cross_mha_block(x, enc_out, enc_addmask, lp, h, d_model)
    # 3) position-wise FFN + add&norm (LN fused into the second linear).
    #    FFN2's K is pre-padded to FFN1's padded N, so no slice in between.
    x_flat = x.reshape(B * S, D)
    f = linear_apply(x_flat, lp["ffn1"], relu=True, out_dtype=jnp.bfloat16)
    x = linear_ln_apply(f, lp["ffn2"], x_flat).reshape(B, S, D)
    return x


def positional_encoding(max_len, d_embed):
    pos = jnp.arange(max_len, dtype=jnp.float32)[:, None]
    i2 = jnp.arange(0, d_embed, 2, dtype=jnp.float32)
    angle = pos / jnp.power(10000.0, i2 / d_embed)
    enc = jnp.zeros((max_len, d_embed), jnp.float32)
    enc = enc.at[:, 0::2].set(jnp.sin(angle))
    enc = enc.at[:, 1::2].set(jnp.cos(angle))
    return enc


def decoder_forward(params, tokens, mask, enc_out, enc_mask, *, h, d_model,
                    d_embed, vocab_size):
    B, S = tokens.shape
    # TransformerEmbedding: embedding * sqrt(d_embed) + positional encoding
    # TODO(synk): embedding gather done with jnp.take (plain JAX), dropout = identity.
    emb = jnp.take(params["emb_table"], tokens, axis=0) * math.sqrt(d_embed)
    x = emb + params["pos_enc"][:S, :][None, :, :]
    # Pre-convert 0/1 masks to additive f32 masks once (0 keep / -1e9 masked).
    neg = jnp.float32(-1e9)
    self_addmask = jnp.where(mask[:, 0] == 0, neg, jnp.float32(0.0))      # (B, S, S)
    enc_addmask = jnp.where(enc_mask[:, 0] == 0, neg, jnp.float32(0.0))   # (B, S, Sk)
    for lp in params["layers"]:
        x = decoder_layer(x, self_addmask, enc_out, enc_addmask, lp, h, d_model)
    out = linear_apply(x.reshape(B * S, d_model), params["out"])
    return out[:, :vocab_size].reshape(B, S, vocab_size)


# ----------------------------------------------------------------------------
# Parameter initialization (raw, torch-like) + one-time prep (pad / cast / fold)
# ----------------------------------------------------------------------------
def init_linear_params(key, din, dout, scale=0.05):
    kw, kb = jax.random.split(key)
    W = jax.random.normal(kw, (din, dout), jnp.float32) * scale
    b = jax.random.normal(kb, (dout,), jnp.float32) * scale
    return W, b


def init_mha_params(key, d_embed, d_model, *, self_attn):
    ks = jax.random.split(key, 4)
    Wq, bq = init_linear_params(ks[0], d_embed, d_model)
    Wk, bk = init_linear_params(ks[1], d_embed, d_model)
    Wv, bv = init_linear_params(ks[2], d_embed, d_model)
    Wo, bo = init_linear_params(ks[3], d_model, d_embed)
    if self_attn:
        return dict(Wqkv=jnp.concatenate([Wq, Wk, Wv], axis=1),
                    bqkv=jnp.concatenate([bq, bk, bv], axis=0),
                    Wo=Wo, bo=bo)
    return dict(Wq=Wq, bq=bq,
                Wkv=jnp.concatenate([Wk, Wv], axis=1),
                bkv=jnp.concatenate([bk, bv], axis=0),
                Wo=Wo, bo=bo)


def init_decoder_params(key, num_layers, d_model, d_embed, d_ff, vocab_size, max_len):
    keys = jax.random.split(key, num_layers + 2)
    emb_table = jax.random.normal(keys[0], (vocab_size, d_embed), jnp.float32) * 0.05
    layers = []
    for li in range(num_layers):
        lk = jax.random.split(keys[1 + li], 4)
        W1, b1 = init_linear_params(lk[2], d_model, d_ff)
        W2, b2 = init_linear_params(lk[3], d_ff, d_model)
        layers.append(dict(
            self_attn=init_mha_params(lk[0], d_embed, d_model, self_attn=True),
            cross_attn=init_mha_params(lk[1], d_embed, d_model, self_attn=False),
            ln1_g=jnp.ones((d_model,), jnp.float32), ln1_b=jnp.zeros((d_model,), jnp.float32),
            ln2_g=jnp.ones((d_model,), jnp.float32), ln2_b=jnp.zeros((d_model,), jnp.float32),
            ln3_g=jnp.ones((d_model,), jnp.float32), ln3_b=jnp.zeros((d_model,), jnp.float32),
            ffn_W1=W1, ffn_b1=b1, ffn_W2=W2, ffn_b2=b2,
        ))
    out_W, out_b = init_linear_params(keys[-1], d_model, vocab_size)
    return dict(emb_table=emb_table,
                pos_enc=positional_encoding(max_len, d_embed),
                layers=layers, out_W=out_W, out_b=out_b)


def make_linear_params(W, b):
    """Pre-pad (K -> Kp, N -> Np=128-multiple) + cast weight to bf16 ONCE at init."""
    TM, TN, TK = _tiles()
    K, N = W.shape
    tn = min(TN, _round_up(N, 128))
    Np = _round_up(N, tn)
    tk = K if K <= TK else TK
    Kp = _round_up(K, tk)
    Wp = jnp.pad(W, ((0, Kp - K), (0, Np - N))).astype(jnp.bfloat16)
    bp = jnp.pad(b, (0, Np - N)).reshape(1, Np).astype(jnp.float32)
    return {"w": Wp, "b": bp}


def make_linear_ln_params(W, b, gamma, beta, *, k_pad_to=None):
    """Weight for the LN-fused linear: K optionally padded (zeros), N kept full-row."""
    TM, TN, TK = _tiles()
    K, N = W.shape
    tk = K if K <= TK else TK
    Kp = _round_up(K, tk)
    if k_pad_to is not None and k_pad_to > Kp:
        Kp = k_pad_to
    Wp = jnp.pad(W, ((0, Kp - K), (0, 0))).astype(jnp.bfloat16)
    return {"w": Wp,
            "b": b.reshape(1, N).astype(jnp.float32),
            "g": gamma.reshape(1, N).astype(jnp.float32),
            "bt": beta.reshape(1, N).astype(jnp.float32)}


def prepare_decoder_params(raw, h):
    """Fold softmax scale into Q projections, pre-pad + bf16-cast all matmul weights."""
    d_model = raw["layers"][0]["self_attn"]["Wo"].shape[0]
    dk = d_model // h
    scale = 1.0 / math.sqrt(dk)
    layers = []
    for lp in raw["layers"]:
        sa = lp["self_attn"]
        Wqkv = sa["Wqkv"].at[:, :d_model].multiply(scale)    # scale folded into Q cols
        bqkv = sa["bqkv"].at[:d_model].multiply(scale)
        ca = lp["cross_attn"]
        ffn1 = make_linear_params(lp["ffn_W1"], lp["ffn_b1"])
        d_ff_padded = ffn1["w"].shape[1]
        layers.append(dict(
            qkv=make_linear_params(Wqkv, bqkv),
            self_out=make_linear_ln_params(sa["Wo"], sa["bo"], lp["ln1_g"], lp["ln1_b"]),
            q=make_linear_params(ca["Wq"] * scale, ca["bq"] * scale),
            kv=make_linear_params(ca["Wkv"], ca["bkv"]),
            cross_out=make_linear_ln_params(ca["Wo"], ca["bo"], lp["ln2_g"], lp["ln2_b"]),
            ffn1=ffn1,
            ffn2=make_linear_ln_params(lp["ffn_W2"], lp["ffn_b2"], lp["ln3_g"],
                                       lp["ln3_b"], k_pad_to=d_ff_padded),
        ))
    return dict(emb_table=raw["emb_table"], pos_enc=raw["pos_enc"],
                layers=layers, out=make_linear_params(raw["out_W"], raw["out_b"]))


# ----------------------------------------------------------------------------
if __name__ == "__main__":
    # small shapes consistent with the module
    B, S_dec, S_enc = 2, 8, 8
    d_model = d_embed = 32
    d_ff = 64
    h = 4
    vocab_size = 50
    num_layers = 2

    key = jax.random.PRNGKey(0)
    k_par, k_tok, k_enc = jax.random.split(key, 3)

    raw_params = init_decoder_params(k_par, num_layers, d_model, d_embed, d_ff,
                                     vocab_size, max_len=64)
    params = prepare_decoder_params(raw_params, h)

    tokens = jax.random.randint(k_tok, (B, S_dec), 0, vocab_size, dtype=jnp.int32)
    encoder_output = jax.random.normal(k_enc, (B, S_enc, d_embed), jnp.float32)

    # causal self-attention mask (B, 1, S_dec, S_dec), 1 = keep / 0 = mask
    causal = jnp.tril(jnp.ones((S_dec, S_dec), jnp.float32))
    mask = jnp.broadcast_to(causal[None, None, :, :], (B, 1, S_dec, S_dec))
    # encoder mask (B, 1, S_dec, S_enc): all visible
    encoder_mask = jnp.ones((B, 1, S_dec, S_enc), jnp.float32)

    forward = jax.jit(functools.partial(decoder_forward, h=h, d_model=d_model,
                                        d_embed=d_embed, vocab_size=vocab_size))
    out = forward(params, tokens, mask, encoder_output, encoder_mask)
    out = jax.block_until_ready(out)
    assert out.shape == (B, S_dec, vocab_size)
    assert bool(jnp.all(jnp.isfinite(out)))
    print("KERNEL_OK")
</pallas_src>

<mosaic_0001>
module attributes {stable_mosaic.version = 11 : i64} {
  func.func @_matmul_bias_kernel(%arg0: i32, %arg1: i32, %arg2: i32, %arg3: memref<16x32xbf16, #tpu.memory_space<vmem>>, %arg4: memref<32x128xbf16, #tpu.memory_space<vmem>>, %arg5: memref<1x128xf32, #tpu.memory_space<vmem>>, %arg6: memref<16x128xbf16, #tpu.memory_space<vmem>>, %arg7: memref<16x128xf32, #tpu.memory_space<vmem>>) attributes {dimension_semantics = [#tpu.dimension_semantics<parallel>, #tpu.dimension_semantics<parallel>, #tpu.dimension_semantics<arbitrary>], iteration_bounds = array<i64: 1, 1, 1>, scalar_prefetch = 0 : i64, scratch_operands = 1 : i64, tpu.core_type = #tpu.core_type<tc>, window_params = [{transform_indices = @transform_0, window_bounds = array<i64: 16, 32>}, {transform_indices = @transform_1, window_bounds = array<i64: 32, 128>}, {transform_indices = @transform_2, window_bounds = array<i64: 1, 128>}, {transform_indices = @transform_3, window_bounds = array<i64: 16, 128>}]} {
    %c0_i32 = arith.constant 0 : i32
    %0 = arith.cmpi eq, %arg2, %c0_i32 : i32
    %1 = arith.extui %0 : i1 to i32
    %c0_i32_0 = arith.constant 0 : i32
    %2 = arith.cmpi ne, %1, %c0_i32_0 : i32
    scf.if %2 {
      %cst_10 = arith.constant 0.000000e+00 : f32
      %12 = vector.broadcast %cst_10 : f32 to vector<16x128xf32>
      %c0_11 = arith.constant 0 : index
      %c0_12 = arith.constant 0 : index
      %13 = vector.load %arg7[%c0_11, %c0_12] : memref<16x128xf32, #tpu.memory_space<vmem>>, vector<16x128xf32>
      tpu.vector_store %arg7[%c0_11, %c0_12], %12 {strides = array<i32>} : memref<16x128xf32, #tpu.memory_space<vmem>>, vector<16x128xf32>,
    } else {
    }
    %c0 = arith.constant 0 : index
    %c0_1 = arith.constant 0 : index
    %3 = vector.load %arg7[%c0, %c0_1] : memref<16x128xf32, #tpu.memory_space<vmem>>, vector<16x128xf32>
    %c0_2 = arith.constant 0 : index
    %c0_3 = arith.constant 0 : index
    %4 = vector.load %arg3[%c0_2, %c0_3] : memref<16x32xbf16, #tpu.memory_space<vmem>>, vector<16x32xbf16>
    %c0_4 = arith.constant 0 : index
    %c0_5 = arith.constant 0 : index
    %5 = vector.load %arg4[%c0_4, %c0_5] : memref<32x128xbf16, #tpu.memory_space<vmem>>, vector<32x128xbf16>
    %cst = arith.constant dense<0.000000e+00> : vector<16x128xf32>
    %6 = tpu.matmul %4, %5, %cst {dimension_numbers = #tpu.dot_dimension_numbers<[1], [0], [0], [1], [0, 0, 1, 1], [], []>} : vector<16x32xbf16>, vector<32x128xbf16>, vector<16x128xf32> -> vector<16x128xf32>
    %7 = arith.addf %3, %6 : vector<16x128xf32>
    %c0_6 = arith.constant 0 : index
    %c0_7 = arith.constant 0 : index
    %8 = vector.load %arg7[%c0_6, %c0_7] : memref<16x128xf32, #tpu.memory_space<vmem>>, vector<16x128xf32>
    tpu.vector_store %arg7[%c0_6, %c0_7], %7 {strides = array<i32>} : memref<16x128xf32, #tpu.memory_space<vmem>>, vector<16x128xf32>,
    %c0_i32_8 = arith.constant 0 : i32
    %9 = arith.cmpi eq, %arg2, %c0_i32_8 : i32
    %10 = arith.extui %9 : i1 to i32
    %c0_i32_9 = arith.constant 0 : i32
    %11 = arith.cmpi ne, %10, %c0_i32_9 : i32
    scf.if %11 {
      %c0_10 = arith.constant 0 : index
      %c0_11 = arith.constant 0 : index
      %12 = vector.load %arg7[%c0_10, %c0_11] : memref<16x128xf32, #tpu.memory_space<vmem>>, vector<16x128xf32>
      %c0_12 = arith.constant 0 : index
      %c0_13 = arith.constant 0 : index
      %13 = vector.load %arg5[%c0_12, %c0_13] : memref<1x128xf32, #tpu.memory_space<vmem>>, vector<1x128xf32>
      %14 = vector.broadcast %13 : vector<1x128xf32> to vector<16x128xf32>
      %15 = arith.addf %12, %14 : vector<16x128xf32>
      %16 = arith.truncf %15 : vector<16x128xf32> to vector<16x128xbf16>
      %c0_14 = arith.constant 0 : index
      %c0_15 = arith.constant 0 : index
      %17 = vector.load %arg6[%c0_14, %c0_15] : memref<16x128xbf16, #tpu.memory_space<vmem>>, vector<16x128xbf16>
      tpu.vector_store %arg6[%c0_14, %c0_15], %16 {strides = array<i32>} : memref<16x128xbf16, #tpu.memory_space<vmem>>, vector<16x128xbf16>,
    } else {
    }
    return
  }
  func.func @transform_0(%arg0: i32, %arg1: i32, %arg2: i32) -> (i32, i32) {
    %c0_i32 = arith.constant 0 : i32
    return %arg0, %arg2 : i32, i32
  }
  func.func @transform_1(%arg0: i32, %arg1: i32, %arg2: i32) -> (i32, i32) {
    %c0_i32 = arith.constant 0 : i32
    return %arg2, %arg1 : i32, i32
  }
  func.func @transform_2(%arg0: i32, %arg1: i32, %arg2: i32) -> (i32, i32) {
    %c0_i32 = arith.constant 0 : i32
    %c0_i32_0 = arith.constant 0 : i32
    return %c0_i32, %arg1 : i32, i32
  }
  func.func @transform_3(%arg0: i32, %arg1: i32, %arg2: i32) -> (i32, i32) {
    %c0_i32 = arith.constant 0 : i32
    return %arg0, %arg1 : i32, i32
  }
}

module attributes {stable_mosaic.version = 11 : i64} {
  func.func @_mha_kernel(%arg0: i32, %arg1: i32, %arg2: memref<1x4x8x8xbf16, #tpu.memory_space<vmem>>, %arg3: memref<1x4x8x8xbf16, #tpu.memory_space<vmem>>, %arg4: memref<1x4x8x8xbf16, #tpu.memory_space<vmem>>, %arg5: memref<1x8x8xf32, #tpu.memory_space<vmem>>, %arg6: memref<1x8x32xbf16, #tpu.memory_space<vmem>>) attributes {dimension_semantics = [#tpu.dimension_semantics<parallel>, #tpu.dimension_semantics<parallel>], iteration_bounds = array<i64: 2, 1>, scalar_prefetch = 0 : i64, scratch_operands = 0 : i64, tpu.core_type = #tpu.core_type<tc>, window_params = [{transform_indices = @transform_0, window_bounds = array<i64: 1, 4, 8, 8>}, {transform_indices = @transform_1, window_bounds = array<i64: 1, 4, 8, 8>}, {transform_indices = @transform_2, window_bounds = array<i64: 1, 4, 8, 8>}, {transform_indices = @transform_3, window_bounds = array<i64: 1, 8, 8>}, {transform_indices = @transform_4, window_bounds = array<i64: 1, 8, 32>}]} {
    %c0 = arith.constant 0 : index
    %c0_0 = arith.constant 0 : index
    %c0_1 = arith.constant 0 : index
    %c0_2 = arith.constant 0 : index
    %0 = vector.load %arg2[%c0, %c0_0, %c0_1, %c0_2] : memref<1x4x8x8xbf16, #tpu.memory_space<vmem>>, vector<1x4x8x8xbf16>
    %1 = vector.shape_cast %0 : vector<1x4x8x8xbf16> to vector<4x8x8xbf16>
    %c0_3 = arith.constant 0 : index
    %c0_4 = arith.constant 0 : index
    %c0_5 = arith.constant 0 : index
    %c0_6 = arith.constant 0 : index
    %2 = vector.load %arg3[%c0_3, %c0_4, %c0_5, %c0_6] : memref<1x4x8x8xbf16, #tpu.memory_space<vmem>>, vector<1x4x8x8xbf16>
    %3 = vector.shape_cast %2 : vector<1x4x8x8xbf16> to vector<4x8x8xbf16>
    %c0_7 = arith.constant 0 : index
    %c0_8 = arith.constant 0 : index
    %c0_9 = arith.constant 0 : index
    %c0_10 = arith.constant 0 : index
    %4 = vector.load %arg4[%c0_7, %c0_8, %c0_9, %c0_10] : memref<1x4x8x8xbf16, #tpu.memory_space<vmem>>, vector<1x4x8x8xbf16>
    %5 = vector.shape_cast %4 : vector<1x4x8x8xbf16> to vector<4x8x8xbf16>
    "tpu.trace_start"() <{level = 10 : i32, message = "hqd,hkd->hqk"}> : () -> ()
    %cst = arith.constant dense<0.000000e+00> : vector<4x8x8xf32>
    %6 = tpu.matmul %1, %3, %cst {dimension_numbers = #tpu.dot_dimension_numbers<[2], [2], [1], [1], [0, 0, 0, 1, 1, 1], [0], [0]>} : vector<4x8x8xbf16>, vector<4x8x8xbf16>, vector<4x8x8xf32> -> vector<4x8x8xf32>
    "tpu.trace_stop"() : () -> ()
    %c0_11 = arith.constant 0 : index
    %c0_12 = arith.constant 0 : index
    %c0_13 = arith.constant 0 : index
    %7 = vector.load %arg5[%c0_11, %c0_12, %c0_13] : memref<1x8x8xf32, #tpu.memory_space<vmem>>, vector<1x8x8xf32>
    %8 = vector.shape_cast %7 : vector<1x8x8xf32> to vector<8x8xf32>
    %9 = vector.shape_cast %8 : vector<8x8xf32> to vector<1x8x8xf32>
    %10 = vector.broadcast %9 : vector<1x8x8xf32> to vector<4x8x8xf32>
    %11 = arith.addf %6, %10 : vector<4x8x8xf32>
    %cst_14 = arith.constant dense<0xFF800000> : vector<4x8xf32>
    %12 = vector.multi_reduction <maximumf>, %11, %cst_14 [2] : vector<4x8x8xf32> to vector<4x8xf32>
    %13 = vector.shape_cast %12 : vector<4x8xf32> to vector<4x8x1xf32>
    %14 = vector.broadcast %13 : vector<4x8x1xf32> to vector<4x8x8xf32>
    %15 = arith.subf %11, %14 : vector<4x8x8xf32>
    %16 = math.exp %15 : vector<4x8x8xf32>
    %cst_15 = arith.constant dense<0.000000e+00> : vector<4x8xf32>
    %17 = vector.multi_reduction <add>, %16, %cst_15 [2] : vector<4x8x8xf32> to vector<4x8xf32>
    %18 = vector.shape_cast %17 : vector<4x8xf32> to vector<4x8x1xf32>
    %19 = tpu.reciprocal %18 {approx = true} : vector<4x8x1xf32> -> vector<4x8x1xf32>
    %20 = vector.broadcast %19 : vector<4x8x1xf32> to vector<4x8x8xf32>
    %21 = arith.mulf %16, %20 : vector<4x8x8xf32>
    %22 = arith.truncf %21 : vector<4x8x8xf32> to vector<4x8x8xbf16>
    "tpu.trace_start"() <{level = 10 : i32, message = "hqk,hkd->hqd"}> : () -> ()
    %cst_16 = arith.constant dense<0.000000e+00> : vector<4x8x8xf32>
    %23 = tpu.matmul %22, %5, %cst_16 {dimension_numbers = #tpu.dot_dimension_numbers<[2], [1], [1], [2], [0, 0, 0, 1, 1, 2], [0], [0]>} : vector<4x8x8xbf16>, vector<4x8x8xbf16>, vector<4x8x8xf32> -> vector<4x8x8xf32>
    "tpu.trace_stop"() : () -> ()
    %24 = vector.extract_strided_slice %23 {offsets = [0, 0, 0], sizes = [1, 8, 8], strides = [1, 1, 1]} : vector<4x8x8xf32> to vector<1x8x8xf32>
    %25 = vector.shape_cast %24 : vector<1x8x8xf32> to vector<8x8xf32>
    %26 = vector.extract_strided_slice %23 {offsets = [1, 0, 0], sizes = [1, 8, 8], strides = [1, 1, 1]} : vector<4x8x8xf32> to vector<1x8x8xf32>
    %27 = vector.shape_cast %26 : vector<1x8x8xf32> to vector<8x8xf32>
    %28 = vector.extract_strided_slice %23 {offsets = [2, 0, 0], sizes = [1, 8, 8], strides = [1, 1, 1]} : vector<4x8x8xf32> to vector<1x8x8xf32>
    %29 = vector.shape_cast %28 : vector<1x8x8xf32> to vector<8x8xf32>
    %30 = vector.extract_strided_slice %23 {offsets = [3, 0, 0], sizes = [1, 8, 8], strides = [1, 1, 1]} : vector<4x8x8xf32> to vector<1x8x8xf32>
    %31 = vector.shape_cast %30 : vector<1x8x8xf32> to vector<8x8xf32>
    %32 = tpu.concatenate %25, %27, %29, %31 in 1 : vector<8x8xf32>, vector<8x8xf32>, vector<8x8xf32>, vector<8x8xf32> -> vector<8x32xf32>
    %33 = arith.truncf %32 : vector<8x32xf32> to vector<8x32xbf16>
    %c0_17 = arith.constant 0 : index
    %c0_18 = arith.constant 0 : index
    %c0_19 = arith.constant 0 : index
    %34 = vector.load %arg6[%c0_17, %c0_18, %c0_19] : memref<1x8x32xbf16, #tpu.memory_space<vmem>>, vector<1x8x32xbf16>
    %35 = vector.shape_cast %34 : vector<1x8x32xbf16> to vector<8x32xbf16>
    %36 = vector.shape_cast %33 : vector<8x32xbf16> to vector<1x8x32xbf16>
    tpu.vector_store %arg6[%c0_17, %c0_18, %c0_19], %36 {strides = array<i32>} : memref<1x8x32xbf16, #tpu.memory_space<vmem>>, vector<1x8x32xbf16>,
    return
  }
  func.func @transform_0(%arg0: i32, %arg1: i32) -> (i32, i32, i32, i32) {
    %c0_i32 = arith.constant 0 : i32
    %c0_i32_0 = arith.constant 0 : i32
    %c0_i32_1 = arith.constant 0 : i32
    return %arg0, %c0_i32, %arg1, %c0_i32_0 : i32, i32, i32, i32
  }
  func.func @transform_1(%arg0: i32, %arg1: i32) -> (i32, i32, i32, i32) {
    %c0_i32 = arith.constant 0 : i32
    %c0_i32_0 = arith.constant 0 : i32
    %c0_i32_1 = arith.constant 0 : i32
    %c0_i32_2 = arith.constant 0 : i32
    return %arg0, %c0_i32, %c0_i32_0, %c0_i32_1 : i32, i32, i32, i32
  }
  func.func @transform_2(%arg0: i32, %arg1: i32) -> (i32, i32, i32, i32) {
    %c0_i32 = arith.constant 0 : i32
    %c0_i32_0 = arith.constant 0 : i32
    %c0_i32_1 = arith.constant 0 : i32
    %c0_i32_2 = arith.constant 0 : i32
    return %arg0, %c0_i32, %c0_i32_0, %c0_i32_1 : i32, i32, i32, i32
  }
  func.func @transform_3(%arg0: i32, %arg1: i32) -> (i32, i32, i32) {
    %c0_i32 = arith.constant 0 : i32
    %c0_i32_0 = arith.constant 0 : i32
    return %arg0, %arg1, %c0_i32 : i32, i32, i32
  }
  func.func @transform_4(%arg0: i32, %arg1: i32) -> (i32, i32, i32) {
    %c0_i32 = arith.constant 0 : i32
    %c0_i32_0 = arith.constant 0 : i32
    return %arg0, %arg1, %c0_i32 : i32, i32, i32
  }
}

module attributes {stable_mosaic.version = 11 : i64} {
  func.func @_matmul_bias_add_ln_kernel(%arg0: i32, %arg1: i32, %arg2: memref<16x32xbf16, #tpu.memory_space<vmem>>, %arg3: memref<32x32xbf16, #tpu.memory_space<vmem>>, %arg4: memref<1x32xf32, #tpu.memory_space<vmem>>, %arg5: memref<16x32xf32, #tpu.memory_space<vmem>>, %arg6: memref<1x32xf32, #tpu.memory_space<vmem>>, %arg7: memref<1x32xf32, #tpu.memory_space<vmem>>, %arg8: memref<16x32xf32, #tpu.memory_space<vmem>>, %arg9: memref<16x32xf32, #tpu.memory_space<vmem>>) attributes {dimension_semantics = [#tpu.dimension_semantics<parallel>, #tpu.dimension_semantics<arbitrary>], iteration_bounds = array<i64: 1, 1>, scalar_prefetch = 0 : i64, scratch_operands = 1 : i64, tpu.core_type = #tpu.core_type<tc>, window_params = [{transform_indices = @transform_0, window_bounds = array<i64: 16, 32>}, {transform_indices = @transform_1, window_bounds = array<i64: 32, 32>}, {pipeline_mode = #tpu.pipeline_mode<synchronous>, transform_indices = @transform_2, window_bounds = array<i64: 1, 32>}, {transform_indices = @transform_3, window_bounds = array<i64: 16, 32>}, {pipeline_mode = #tpu.pipeline_mode<synchronous>, transform_indices = @transform_4, window_bounds = array<i64: 1, 32>}, {pipeline_mode = #tpu.pipeline_mode<synchronous>, transform_indices = @transform_5, window_bounds = array<i64: 1, 32>}, {transform_indices = @transform_6, window_bounds = array<i64: 16, 32>}]} {
    %c0_i32 = arith.constant 0 : i32
    %0 = arith.cmpi eq, %arg1, %c0_i32 : i32
    %1 = arith.extui %0 : i1 to i32
    %c0_i32_0 = arith.constant 0 : i32
    %2 = arith.cmpi ne, %1, %c0_i32_0 : i32
    scf.if %2 {
      %cst_10 = arith.constant 0.000000e+00 : f32
      %12 = vector.broadcast %cst_10 : f32 to vector<16x32xf32>
      %c0_11 = arith.constant 0 : index
      %c0_12 = arith.constant 0 : index
      %13 = vector.load %arg9[%c0_11, %c0_12] : memref<16x32xf32, #tpu.memory_space<vmem>>, vector<16x32xf32>
      tpu.vector_store %arg9[%c0_11, %c0_12], %12 {strides = array<i32>} : memref<16x32xf32, #tpu.memory_space<vmem>>, vector<16x32xf32>,
    } else {
    }
    %c0 = arith.constant 0 : index
    %c0_1 = arith.constant 0 : index
    %3 = vector.load %arg9[%c0, %c0_1] : memref<16x32xf32, #tpu.memory_space<vmem>>, vector<16x32xf32>
    %c0_2 = arith.constant 0 : index
    %c0_3 = arith.constant 0 : index
    %4 = vector.load %arg2[%c0_2, %c0_3] : memref<16x32xbf16, #tpu.memory_space<vmem>>, vector<16x32xbf16>
    %c0_4 = arith.constant 0 : index
    %c0_5 = arith.constant 0 : index
    %5 = vector.load %arg3[%c0_4, %c0_5] : memref<32x32xbf16, #tpu.memory_space<vmem>>, vector<32x32xbf16>
    %cst = arith.constant dense<0.000000e+00> : vector<16x32xf32>
    %6 = tpu.matmul %4, %5, %cst {dimension_numbers = #tpu.dot_dimension_numbers<[1], [0], [0], [1], [0, 0, 1, 1], [], []>} : vector<16x32xbf16>, vector<32x32xbf16>, vector<16x32xf32> -> vector<16x32xf32>
    %7 = arith.addf %3, %6 : vector<16x32xf32>
    %c0_6 = arith.constant 0 : index
    %c0_7 = arith.constant 0 : index
    %8 = vector.load %arg9[%c0_6, %c0_7] : memref<16x32xf32, #tpu.memory_space<vmem>>, vector<16x32xf32>
    tpu.vector_store %arg9[%c0_6, %c0_7], %7 {strides = array<i32>} : memref<16x32xf32, #tpu.memory_space<vmem>>, vector<16x32xf32>,
    %c0_i32_8 = arith.constant 0 : i32
    %9 = arith.cmpi eq, %arg1, %c0_i32_8 : i32
    %10 = arith.extui %9 : i1 to i32
    %c0_i32_9 = arith.constant 0 : i32
    %11 = arith.cmpi ne, %10, %c0_i32_9 : i32
    scf.if %11 {
      %c0_10 = arith.constant 0 : index
      %c0_11 = arith.constant 0 : index
      %12 = vector.load %arg9[%c0_10, %c0_11] : memref<16x32xf32, #tpu.memory_space<vmem>>, vector<16x32xf32>
      %c0_12 = arith.constant 0 : index
      %c0_13 = arith.constant 0 : index
      %13 = vector.load %arg4[%c0_12, %c0_13] : memref<1x32xf32, #tpu.memory_space<vmem>>, vector<1x32xf32>
      %14 = vector.broadcast %13 : vector<1x32xf32> to vector<16x32xf32>
      %15 = arith.addf %12, %14 : vector<16x32xf32>
      %c0_14 = arith.constant 0 : index
      %c0_15 = arith.constant 0 : index
      %16 = vector.load %arg5[%c0_14, %c0_15] : memref<16x32xf32, #tpu.memory_space<vmem>>, vector<16x32xf32>
      %17 = arith.addf %15, %16 : vector<16x32xf32>
      %cst_16 = arith.constant dense<0.000000e+00> : vector<16xf32>
      %18 = vector.multi_reduction <add>, %17, %cst_16 [1] : vector<16x32xf32> to vector<16xf32>
      %19 = vector.shape_cast %18 : vector<16xf32> to vector<16x1xf32>
      %cst_17 = arith.constant 3.200000e+01 : f32
      %20 = vector.broadcast %cst_17 : f32 to vector<16x1xf32>
      %21 = arith.divf %19, %20 : vector<16x1xf32>
      %22 = vector.broadcast %21 : vector<16x1xf32> to vector<16x32xf32>
      %23 = arith.subf %17, %22 : vector<16x32xf32>
      %24 = arith.mulf %23, %23 : vector<16x32xf32>
      %cst_18 = arith.constant dense<0.000000e+00> : vector<16xf32>
      %25 = vector.multi_reduction <add>, %24, %cst_18 [1] : vector<16x32xf32> to vector<16xf32>
      %26 = vector.shape_cast %25 : vector<16xf32> to vector<16x1xf32>
      %cst_19 = arith.constant 0.0322580636 : f32
      %27 = vector.broadcast %cst_19 : f32 to vector<16x1xf32>
      %28 = arith.mulf %26, %27 : vector<16x1xf32>
      %29 = math.sqrt %28 : vector<16x1xf32>
      %cst_20 = arith.constant 9.99999996E-13 : f32
      %30 = vector.broadcast %cst_20 : f32 to vector<16x1xf32>
      %31 = arith.addf %29, %30 : vector<16x1xf32>
      %32 = vector.broadcast %31 : vector<16x1xf32> to vector<16x32xf32>
      %33 = arith.divf %23, %32 : vector<16x32xf32>
      %c0_21 = arith.constant 0 : index
      %c0_22 = arith.constant 0 : index
      %34 = vector.load %arg6[%c0_21, %c0_22] : memref<1x32xf32, #tpu.memory_space<vmem>>, vector<1x32xf32>
      %35 = vector.broadcast %34 : vector<1x32xf32> to vector<16x32xf32>
      %36 = arith.mulf %35, %33 : vector<16x32xf32>
      %c0_23 = arith.constant 0 : index
      %c0_24 = arith.constant 0 : index
      %37 = vector.load %arg7[%c0_23, %c0_24] : memref<1x32xf32, #tpu.memory_space<vmem>>, vector<1x32xf32>
      %38 = vector.broadcast %37 : vector<1x32xf32> to vector<16x32xf32>
      %39 = arith.addf %36, %38 : vector<16x32xf32>
      %c0_25 = arith.constant 0 : index
      %c0_26 = arith.constant 0 : index
      %40 = vector.load %arg8[%c0_25, %c0_26] : memref<16x32xf32, #tpu.memory_space<vmem>>, vector<16x32xf32>
      tpu.vector_store %arg8[%c0_25, %c0_26], %39 {strides = array<i32>} : memref<16x32xf32, #tpu.memory_space<vmem>>, vector<16x32xf32>,
    } else {
    }
    return
  }
  func.func @transform_0(%arg0: i32, %arg1: i32) -> (i32, i32) {
    %c0_i32 = arith.constant 0 : i32
    return %arg0, %arg1 : i32, i32
  }
  func.func @transform_1(%arg0: i32, %arg1: i32) -> (i32, i32) {
    %c0_i32 = arith.constant 0 : i32
    %c0_i32_0 = arith.constant 0 : i32
    return %arg1, %c0_i32 : i32, i32
  }
  func.func @transform_2(%arg0: i32, %arg1: i32) -> (i32, i32) {
    %c0_i32 = arith.constant 0 : i32
    %c0_i32_0 = arith.constant 0 : i32
    %c0_i32_1 = arith.constant 0 : i32
    return %c0_i32, %c0_i32_0 : i32, i32
  }
  func.func @transform_3(%arg0: i32, %arg1: i32) -> (i32, i32) {
    %c0_i32 = arith.constant 0 : i32
    %c0_i32_0 = arith.constant 0 : i32
    return %arg0, %c0_i32 : i32, i32
  }
  func.func @transform_4(%arg0: i32, %arg1: i32) -> (i32, i32) {
    %c0_i32 = arith.constant 0 : i32
    %c0_i32_0 = arith.constant 0 : i32
    %c0_i32_1 = arith.constant 0 : i32
    return %c0_i32, %c0_i32_0 : i32, i32
  }
  func.func @transform_5(%arg0: i32, %arg1: i32) -> (i32, i32) {
    %c0_i32 = arith.constant 0 : i32
    %c0_i32_0 = arith.constant 0 : i32
    %c0_i32_1 = arith.constant 0 : i32
    return %c0_i32, %c0_i32_0 : i32, i32
  }
  func.func @transform_6(%arg0: i32, %arg1: i32) -> (i32, i32) {
    %c0_i32 = arith.constant 0 : i32
    %c0_i32_0 = arith.constant 0 : i32
    return %arg0, %c0_i32 : i32, i32
  }
}

module attributes {stable_mosaic.version = 11 : i64} {
  func.func @_matmul_bias_add_ln_kernel(%arg0: i32, %arg1: i32, %arg2: memref<16x128xbf16, #tpu.memory_space<vmem>>, %arg3: memref<128x32xbf16, #tpu.memory_space<vmem>>, %arg4: memref<1x32xf32, #tpu.memory_space<vmem>>, %arg5: memref<16x32xf32, #tpu.memory_space<vmem>>, %arg6: memref<1x32xf32, #tpu.memory_space<vmem>>, %arg7: memref<1x32xf32, #tpu.memory_space<vmem>>, %arg8: memref<16x32xf32, #tpu.memory_space<vmem>>, %arg9: memref<16x32xf32, #tpu.memory_space<vmem>>) attributes {dimension_semantics = [#tpu.dimension_semantics<parallel>, #tpu.dimension_semantics<arbitrary>], iteration_bounds = array<i64: 1, 1>, scalar_prefetch = 0 : i64, scratch_operands = 1 : i64, tpu.core_type = #tpu.core_type<tc>, window_params = [{transform_indices = @transform_0, window_bounds = array<i64: 16, 128>}, {transform_indices = @transform_1, window_bounds = array<i64: 128, 32>}, {pipeline_mode = #tpu.pipeline_mode<synchronous>, transform_indices = @transform_2, window_bounds = array<i64: 1, 32>}, {transform_indices = @transform_3, window_bounds = array<i64: 16, 32>}, {pipeline_mode = #tpu.pipeline_mode<synchronous>, transform_indices = @transform_4, window_bounds = array<i64: 1, 32>}, {pipeline_mode = #tpu.pipeline_mode<synchronous>, transform_indices = @transform_5, window_bounds = array<i64: 1, 32>}, {transform_indices = @transform_6, window_bounds = array<i64: 16, 32>}]} {
    %c0_i32 = arith.constant 0 : i32
    %0 = arith.cmpi eq, %arg1, %c0_i32 : i32
    %1 = arith.extui %0 : i1 to i32
    %c0_i32_0 = arith.constant 0 : i32
    %2 = arith.cmpi ne, %1, %c0_i32_0 : i32
    scf.if %2 {
      %cst_10 = arith.constant 0.000000e+00 : f32
      %12 = vector.broadcast %cst_10 : f32 to vector<16x32xf32>
      %c0_11 = arith.constant 0 : index
      %c0_12 = arith.constant 0 : index
      %13 = vector.load %arg9[%c0_11, %c0_12] : memref<16x32xf32, #tpu.memory_space<vmem>>, vector<16x32xf32>
      tpu.vector_store %arg9[%c0_11, %c0_12], %12 {strides = array<i32>} : memref<16x32xf32, #tpu.memory_space<vmem>>, vector<16x32xf32>,
    } else {
    }
    %c0 = arith.constant 0 : index
    %c0_1 = arith.constant 0 : index
    %3 = vector.load %arg9[%c0, %c0_1] : memref<16x32xf32, #tpu.memory_space<vmem>>, vector<16x32xf32>
    %c0_2 = arith.constant 0 : index
    %c0_3 = arith.constant 0 : index
    %4 = vector.load %arg2[%c0_2, %c0_3] : memref<16x128xbf16, #tpu.memory_space<vmem>>, vector<16x128xbf16>
    %c0_4 = arith.constant 0 : index
    %c0_5 = arith.constant 0 : index
    %5 = vector.load %arg3[%c0_4, %c0_5] : memref<128x32xbf16, #tpu.memory_space<vmem>>, vector<128x32xbf16>
    %cst = arith.constant dense<0.000000e+00> : vector<16x32xf32>
    %6 = tpu.matmul %4, %5, %cst {dimension_numbers = #tpu.dot_dimension_numbers<[1], [0], [0], [1], [0, 0, 1, 1], [], []>} : vector<16x128xbf16>, vector<128x32xbf16>, vector<16x32xf32> -> vector<16x32xf32>
    %7 = arith.addf %3, %6 : vector<16x32xf32>
    %c0_6 = arith.constant 0 : index
    %c0_7 = arith.constant 0 : index
    %8 = vector.load %arg9[%c0_6, %c0_7] : memref<16x32xf32, #tpu.memory_space<vmem>>, vector<16x32xf32>
    tpu.vector_store %arg9[%c0_6, %c0_7], %7 {strides = array<i32>} : memref<16x32xf32, #tpu.memory_space<vmem>>, vector<16x32xf32>,
    %c0_i32_8 = arith.constant 0 : i32
    %9 = arith.cmpi eq, %arg1, %c0_i32_8 : i32
    %10 = arith.extui %9 : i1 to i32
    %c0_i32_9 = arith.constant 0 : i32
    %11 = arith.cmpi ne, %10, %c0_i32_9 : i32
    scf.if %11 {
      %c0_10 = arith.constant 0 : index
      %c0_11 = arith.constant 0 : index
      %12 = vector.load %arg9[%c0_10, %c0_11] : memref<16x32xf32, #tpu.memory_space<vmem>>, vector<16x32xf32>
      %c0_12 = arith.constant 0 : index
      %c0_13 = arith.constant 0 : index
      %13 = vector.load %arg4[%c0_12, %c0_13] : memref<1x32xf32, #tpu.memory_space<vmem>>, vector<1x32xf32>
      %14 = vector.broadcast %13 : vector<1x32xf32> to vector<16x32xf32>
      %15 = arith.addf %12, %14 : vector<16x32xf32>
      %c0_14 = arith.constant 0 : index
      %c0_15 = arith.constant 0 : index
      %16 = vector.load %arg5[%c0_14, %c0_15] : memref<16x32xf32, #tpu.memory_space<vmem>>, vector<16x32xf32>
      %17 = arith.addf %15, %16 : vector<16x32xf32>
      %cst_16 = arith.constant dense<0.000000e+00> : vector<16xf32>
      %18 = vector.multi_reduction <add>, %17, %cst_16 [1] : vector<16x32xf32> to vector<16xf32>
      %19 = vector.shape_cast %18 : vector<16xf32> to vector<16x1xf32>
      %cst_17 = arith.constant 3.200000e+01 : f32
      %20 = vector.broadcast %cst_17 : f32 to vector<16x1xf32>
      %21 = arith.divf %19, %20 : vector<16x1xf32>
      %22 = vector.broadcast %21 : vector<16x1xf32> to vector<16x32xf32>
      %23 = arith.subf %17, %22 : vector<16x32xf32>
      %24 = arith.mulf %23, %23 : vector<16x32xf32>
      %cst_18 = arith.constant dense<0.000000e+00> : vector<16xf32>
      %25 = vector.multi_reduction <add>, %24, %cst_18 [1] : vector<16x32xf32> to vector<16xf32>
      %26 = vector.shape_cast %25 : vector<16xf32> to vector<16x1xf32>
      %cst_19 = arith.constant 0.0322580636 : f32
      %27 = vector.broadcast %cst_19 : f32 to vector<16x1xf32>
      %28 = arith.mulf %26, %27 : vector<16x1xf32>
      %29 = math.sqrt %28 : vector<16x1xf32>
      %cst_20 = arith.constant 9.99999996E-13 : f32
      %30 = vector.broadcast %cst_20 : f32 to vector<16x1xf32>
      %31 = arith.addf %29, %30 : vector<16x1xf32>
      %32 = vector.broadcast %31 : vector<16x1xf32> to vector<16x32xf32>
      %33 = arith.divf %23, %32 : vector<16x32xf32>
      %c0_21 = arith.constant 0 : index
      %c0_22 = arith.constant 0 : index
      %34 = vector.load %arg6[%c0_21, %c0_22] : memref<1x32xf32, #tpu.memory_space<vmem>>, vector<1x32xf32>
      %35 = vector.broadcast %34 : vector<1x32xf32> to vector<16x32xf32>
      %36 = arith.mulf %35, %33 : vector<16x32xf32>
      %c0_23 = arith.constant 0 : index
      %c0_24 = arith.constant 0 : index
      %37 = vector.load %arg7[%c0_23, %c0_24] : memref<1x32xf32, #tpu.memory_space<vmem>>, vector<1x32xf32>
      %38 = vector.broadcast %37 : vector<1x32xf32> to vector<16x32xf32>
      %39 = arith.addf %36, %38 : vector<16x32xf32>
      %c0_25 = arith.constant 0 : index
      %c0_26 = arith.constant 0 : index
      %40 = vector.load %arg8[%c0_25, %c0_26] : memref<16x32xf32, #tpu.memory_space<vmem>>, vector<16x32xf32>
      tpu.vector_store %arg8[%c0_25, %c0_26], %39 {strides = array<i32>} : memref<16x32xf32, #tpu.memory_space<vmem>>, vector<16x32xf32>,
    } else {
    }
    return
  }
  func.func @transform_0(%arg0: i32, %arg1: i32) -> (i32, i32) {
    %c0_i32 = arith.constant 0 : i32
    return %arg0, %arg1 : i32, i32
  }
  func.func @transform_1(%arg0: i32, %arg1: i32) -> (i32, i32) {
    %c0_i32 = arith.constant 0 : i32
    %c0_i32_0 = arith.constant 0 : i32
    return %arg1, %c0_i32 : i32, i32
  }
  func.func @transform_2(%arg0: i32, %arg1: i32) -> (i32, i32) {
    %c0_i32 = arith.constant 0 : i32
    %c0_i32_0 = arith.constant 0 : i32
    %c0_i32_1 = arith.constant 0 : i32
    return %c0_i32, %c0_i32_0 : i32, i32
  }
  func.func @transform_3(%arg0: i32, %arg1: i32) -> (i32, i32) {
    %c0_i32 = arith.constant 0 : i32
    %c0_i32_0 = arith.constant 0 : i32
    return %arg0, %c0_i32 : i32, i32
  }
  func.func @transform_4(%arg0: i32, %arg1: i32) -> (i32, i32) {
    %c0_i32 = arith.constant 0 : i32
    %c0_i32_0 = arith.constant 0 : i32
    %c0_i32_1 = arith.constant 0 : i32
    return %c0_i32, %c0_i32_0 : i32, i32
  }
  func.func @transform_5(%arg0: i32, %arg1: i32) -> (i32, i32) {
    %c0_i32 = arith.constant 0 : i32
    %c0_i32_0 = arith.constant 0 : i32
    %c0_i32_1 = arith.constant 0 : i32
    return %c0_i32, %c0_i32_0 : i32, i32
  }
  func.func @transform_6(%arg0: i32, %arg1: i32) -> (i32, i32) {
    %c0_i32 = arith.constant 0 : i32
    %c0_i32_0 = arith.constant 0 : i32
    return %arg0, %c0_i32 : i32, i32
  }
}

module attributes {stable_mosaic.version = 11 : i64} {
  func.func @_matmul_bias_kernel(%arg0: i32, %arg1: i32, %arg2: i32, %arg3: memref<16x32xbf16, #tpu.memory_space<vmem>>, %arg4: memref<32x128xbf16, #tpu.memory_space<vmem>>, %arg5: memref<1x128xf32, #tpu.memory_space<vmem>>, %arg6: memref<16x128xf32, #tpu.memory_space<vmem>>, %arg7: memref<16x128xf32, #tpu.memory_space<vmem>>) attributes {dimension_semantics = [#tpu.dimension_semantics<parallel>, #tpu.dimension_semantics<parallel>, #tpu.dimension_semantics<arbitrary>], iteration_bounds = array<i64: 1, 1, 1>, scalar_prefetch = 0 : i64, scratch_operands = 1 : i64, tpu.core_type = #tpu.core_type<tc>, window_params = [{transform_indices = @transform_0, window_bounds = array<i64: 16, 32>}, {transform_indices = @transform_1, window_bounds = array<i64: 32, 128>}, {transform_indices = @transform_2, window_bounds = array<i64: 1, 128>}, {transform_indices = @transform_3, window_bounds = array<i64: 16, 128>}]} {
    %c0_i32 = arith.constant 0 : i32
    %0 = arith.cmpi eq, %arg2, %c0_i32 : i32
    %1 = arith.extui %0 : i1 to i32
    %c0_i32_0 = arith.constant 0 : i32
    %2 = arith.cmpi ne, %1, %c0_i32_0 : i32
    scf.if %2 {
      %cst_10 = arith.constant 0.000000e+00 : f32
      %12 = vector.broadcast %cst_10 : f32 to vector<16x128xf32>
      %c0_11 = arith.constant 0 : index
      %c0_12 = arith.constant 0 : index
      %13 = vector.load %arg7[%c0_11, %c0_12] : memref<16x128xf32, #tpu.memory_space<vmem>>, vector<16x128xf32>
      tpu.vector_store %arg7[%c0_11, %c0_12], %12 {strides = array<i32>} : memref<16x128xf32, #tpu.memory_space<vmem>>, vector<16x128xf32>,
    } else {
    }
    %c0 = arith.constant 0 : index
    %c0_1 = arith.constant 0 : index
    %3 = vector.load %arg7[%c0, %c0_1] : memref<16x128xf32, #tpu.memory_space<vmem>>, vector<16x128xf32>
    %c0_2 = arith.constant 0 : index
    %c0_3 = arith.constant 0 : index
    %4 = vector.load %arg3[%c0_2, %c0_3] : memref<16x32xbf16, #tpu.memory_space<vmem>>, vector<16x32xbf16>
    %c0_4 = arith.constant 0 : index
    %c0_5 = arith.constant 0 : index
    %5 = vector.load %arg4[%c0_4, %c0_5] : memref<32x128xbf16, #tpu.memory_space<vmem>>, vector<32x128xbf16>
    %cst = arith.constant dense<0.000000e+00> : vector<16x128xf32>
    %6 = tpu.matmul %4, %5, %cst {dimension_numbers = #tpu.dot_dimension_numbers<[1], [0], [0], [1], [0, 0, 1, 1], [], []>} : vector<16x32xbf16>, vector<32x128xbf16>, vector<16x128xf32> -> vector<16x128xf32>
    %7 = arith.addf %3, %6 : vector<16x128xf32>
    %c0_6 = arith.constant 0 : index
    %c0_7 = arith.constant 0 : index
    %8 = vector.load %arg7[%c0_6, %c0_7] : memref<16x128xf32, #tpu.memory_space<vmem>>, vector<16x128xf32>
    tpu.vector_store %arg7[%c0_6, %c0_7], %7 {strides = array<i32>} : memref<16x128xf32, #tpu.memory_space<vmem>>, vector<16x128xf32>,
    %c0_i32_8 = arith.constant 0 : i32
    %9 = arith.cmpi eq, %arg2, %c0_i32_8 : i32
    %10 = arith.extui %9 : i1 to i32
    %c0_i32_9 = arith.constant 0 : i32
    %11 = arith.cmpi ne, %10, %c0_i32_9 : i32
    scf.if %11 {
      %c0_10 = arith.constant 0 : index
      %c0_11 = arith.constant 0 : index
      %12 = vector.load %arg7[%c0_10, %c0_11] : memref<16x128xf32, #tpu.memory_space<vmem>>, vector<16x128xf32>
      %c0_12 = arith.constant 0 : index
      %c0_13 = arith.constant 0 : index
      %13 = vector.load %arg5[%c0_12, %c0_13] : memref<1x128xf32, #tpu.memory_space<vmem>>, vector<1x128xf32>
      %14 = vector.broadcast %13 : vector<1x128xf32> to vector<16x128xf32>
      %15 = arith.addf %12, %14 : vector<16x128xf32>
      %c0_14 = arith.constant 0 : index
      %c0_15 = arith.constant 0 : index
      %16 = vector.load %arg6[%c0_14, %c0_15] : memref<16x128xf32, #tpu.memory_space<vmem>>, vector<16x128xf32>
      tpu.vector_store %arg6[%c0_14, %c0_15], %15 {strides = array<i32>} : memref<16x128xf32, #tpu.memory_space<vmem>>, vector<16x128xf32>,
    } else {
    }
    return
  }
  func.func @transform_0(%arg0: i32, %arg1: i32, %arg2: i32) -> (i32, i32) {
    %c0_i32 = arith.constant 0 : i32
    return %arg0, %arg2 : i32, i32
  }
  func.func @transform_1(%arg0: i32, %arg1: i32, %arg2: i32) -> (i32, i32) {
    %c0_i32 = arith.constant 0 : i32
    return %arg2, %arg1 : i32, i32
  }
  func.func @transform_2(%arg0: i32, %arg1: i32, %arg2: i32) -> (i32, i32) {
    %c0_i32 = arith.constant 0 : i32
    %c0_i32_0 = arith.constant 0 : i32
    return %c0_i32, %arg1 : i32, i32
  }
  func.func @transform_3(%arg0: i32, %arg1: i32, %arg2: i32) -> (i32, i32) {
    %c0_i32 = arith.constant 0 : i32
    return %arg0, %arg1 : i32, i32
  }
}

module attributes {stable_mosaic.version = 11 : i64} {
  func.func @_matmul_bias_kernel(%arg0: i32, %arg1: i32, %arg2: i32, %arg3: memref<16x32xbf16, #tpu.memory_space<vmem>>, %arg4: memref<32x128xbf16, #tpu.memory_space<vmem>>, %arg5: memref<1x128xf32, #tpu.memory_space<vmem>>, %arg6: memref<16x128xbf16, #tpu.memory_space<vmem>>, %arg7: memref<16x128xf32, #tpu.memory_space<vmem>>) attributes {dimension_semantics = [#tpu.dimension_semantics<parallel>, #tpu.dimension_semantics<parallel>, #tpu.dimension_semantics<arbitrary>], iteration_bounds = array<i64: 1, 1, 1>, scalar_prefetch = 0 : i64, scratch_operands = 1 : i64, tpu.core_type = #tpu.core_type<tc>, window_params = [{transform_indices = @transform_0, window_bounds = array<i64: 16, 32>}, {transform_indices = @transform_1, window_bounds = array<i64: 32, 128>}, {transform_indices = @transform_2, window_bounds = array<i64: 1, 128>}, {transform_indices = @transform_3, window_bounds = array<i64: 16, 128>}]} {
    %c0_i32 = arith.constant 0 : i32
    %0 = arith.cmpi eq, %arg2, %c0_i32 : i32
    %1 = arith.extui %0 : i1 to i32
    %c0_i32_0 = arith.constant 0 : i32
    %2 = arith.cmpi ne, %1, %c0_i32_0 : i32
    scf.if %2 {
      %cst_10 = arith.constant 0.000000e+00 : f32
      %12 = vector.broadcast %cst_10 : f32 to vector<16x128xf32>
      %c0_11 = arith.constant 0 : index
      %c0_12 = arith.constant 0 : index
      %13 = vector.load %arg7[%c0_11, %c0_12] : memref<16x128xf32, #tpu.memory_space<vmem>>, vector<16x128xf32>
      tpu.vector_store %arg7[%c0_11, %c0_12], %12 {strides = array<i32>} : memref<16x128xf32, #tpu.memory_space<vmem>>, vector<16x128xf32>,
    } else {
    }
    %c0 = arith.constant 0 : index
    %c0_1 = arith.constant 0 : index
    %3 = vector.load %arg7[%c0, %c0_1] : memref<16x128xf32, #tpu.memory_space<vmem>>, vector<16x128xf32>
    %c0_2 = arith.constant 0 : index
    %c0_3 = arith.constant 0 : index
    %4 = vector.load %arg3[%c0_2, %c0_3] : memref<16x32xbf16, #tpu.memory_space<vmem>>, vector<16x32xbf16>
    %c0_4 = arith.constant 0 : index
    %c0_5 = arith.constant 0 : index
    %5 = vector.load %arg4[%c0_4, %c0_5] : memref<32x128xbf16, #tpu.memory_space<vmem>>, vector<32x128xbf16>
    %cst = arith.constant dense<0.000000e+00> : vector<16x128xf32>
    %6 = tpu.matmul %4, %5, %cst {dimension_numbers = #tpu.dot_dimension_numbers<[1], [0], [0], [1], [0, 0, 1, 1], [], []>} : vector<16x32xbf16>, vector<32x128xbf16>, vector<16x128xf32> -> vector<16x128xf32>
    %7 = arith.addf %3, %6 : vector<16x128xf32>
    %c0_6 = arith.constant 0 : index
    %c0_7 = arith.constant 0 : index
    %8 = vector.load %arg7[%c0_6, %c0_7] : memref<16x128xf32, #tpu.memory_space<vmem>>, vector<16x128xf32>
    tpu.vector_store %arg7[%c0_6, %c0_7], %7 {strides = array<i32>} : memref<16x128xf32, #tpu.memory_space<vmem>>, vector<16x128xf32>,
    %c0_i32_8 = arith.constant 0 : i32
    %9 = arith.cmpi eq, %arg2, %c0_i32_8 : i32
    %10 = arith.extui %9 : i1 to i32
    %c0_i32_9 = arith.constant 0 : i32
    %11 = arith.cmpi ne, %10, %c0_i32_9 : i32
    scf.if %11 {
      %c0_10 = arith.constant 0 : index
      %c0_11 = arith.constant 0 : index
      %12 = vector.load %arg7[%c0_10, %c0_11] : memref<16x128xf32, #tpu.memory_space<vmem>>, vector<16x128xf32>
      %c0_12 = arith.constant 0 : index
      %c0_13 = arith.constant 0 : index
      %13 = vector.load %arg5[%c0_12, %c0_13] : memref<1x128xf32, #tpu.memory_space<vmem>>, vector<1x128xf32>
      %14 = vector.broadcast %13 : vector<1x128xf32> to vector<16x128xf32>
      %15 = arith.addf %12, %14 : vector<16x128xf32>
      %cst_14 = arith.constant 0.000000e+00 : f32
      %16 = vector.broadcast %cst_14 : f32 to vector<16x128xf32>
      %17 = arith.maximumf %15, %16 : vector<16x128xf32>
      %18 = arith.truncf %17 : vector<16x128xf32> to vector<16x128xbf16>
      %c0_15 = arith.constant 0 : index
      %c0_16 = arith.constant 0 : index
      %19 = vector.load %arg6[%c0_15, %c0_16] : memref<16x128xbf16, #tpu.memory_space<vmem>>, vector<16x128xbf16>
      tpu.vector_store %arg6[%c0_15, %c0_16], %18 {strides = array<i32>} : memref<16x128xbf16, #tpu.memory_space<vmem>>, vector<16x128xbf16>,
    } else {
    }
    return
  }
  func.func @transform_0(%arg0: i32, %arg1: i32, %arg2: i32) -> (i32, i32) {
    %c0_i32 = arith.constant 0 : i32
    return %arg0, %arg2 : i32, i32
  }
  func.func @transform_1(%arg0: i32, %arg1: i32, %arg2: i32) -> (i32, i32) {
    %c0_i32 = arith.constant 0 : i32
    return %arg2, %arg1 : i32, i32
  }
  func.func @transform_2(%arg0: i32, %arg1: i32, %arg2: i32) -> (i32, i32) {
    %c0_i32 = arith.constant 0 : i32
    %c0_i32_0 = arith.constant 0 : i32
    return %c0_i32, %arg1 : i32, i32
  }
  func.func @transform_3(%arg0: i32, %arg1: i32, %arg2: i32) -> (i32, i32) {
    %c0_i32 = arith.constant 0 : i32
    return %arg0, %arg1 : i32, i32
  }
}

</mosaic_0001>

<llo_original>
// kernel: decoder_forward.19
$region0: #{decoder_forward.19}
  #allocation0 [shape = 'u32[]', space=smem, size = 0x4, offset = 0x4, fixed_abs, tag = 'smem constant byte address 0x4 - core index']
  #allocation1 [shape = 'u32[144,128]{1,0:T(1,128)}', space=vmem, size = 0x12000, scoped, tag = 'internal scratch']
  #allocation2 [shape = 'f32[16,128]{1,0:T(8,128)}', space=vmem, size = 0x2000, scoped, tag = 'scratch operand']
  %s0 = inlined_call_operand.vmem [shape: bf16[16,32], index: 0, kind: input, shape index: {}]
  %s1 = inlined_call_operand.vmem [shape: bf16[32,128], index: 1, kind: input, shape index: {}]
  %s2 = inlined_call_operand.vmem [shape: f32[1,128], index: 2, kind: input, shape index: {}]
  %s3 = inlined_call_operand.vmem [shape: bf16[16,128], index: 3, kind: output, shape index: {}]
  %s4 = sld [smem:[#allocation0]]
  $region30: #{decoder_forward.19} parent=0
    _
  %s6 = ssub.s32 1, %s4
  %s7 = scalar_select 0, %s6, %s4
  // Predicated region
  $region2: #{decoder_forward.19} parent=0 // pred_check
    _
  $region3: #{decoder_forward.19} parent=0 // pred_check_branch
    %9 = sbr.rel (0) target = $region5
  $region4: #{decoder_forward.19} parent=0 // pred_region
    _
  $region5: #{decoder_forward.19} parent=0 // pred_fallthru
    _
  // Predicated region
  $region6: #{decoder_forward.19} parent=0 // pred_check
    _
  $region7: #{decoder_forward.19} parent=0 // pred_check_branch
    %11 = sbr.rel (0) target = $region9
  $region8: #{decoder_forward.19} parent=0 // pred_region
    _
  $region9: #{decoder_forward.19} parent=0 // pred_fallthru
    _
  // Predicated region
  $region10: #{decoder_forward.19} parent=0 // pred_check
    _
  $region11: #{decoder_forward.19} parent=0 // pred_check_branch
    %13 = sbr.rel (0) target = $region13
  $region12: #{decoder_forward.19} parent=0 // pred_region
    _
  $region13: #{decoder_forward.19} parent=0 // pred_fallthru
    _
  %p15 = scmp.eq.s32.totalorder 0, 0
  // Predicated region
  $region14: #{decoder_forward.19} parent=0 // pred_check
    %p16 = pneg %p15
  $region15: #{decoder_forward.19} parent=0 // pred_check_branch
    %18 = sbr.rel (%p16) target = $region17
  $region16: #{decoder_forward.19} parent=0 // pred_region
    %19 = vst [vmem:[#allocation2] sm:$0xff] 0.0
    %20 = vst [vmem:[#allocation2 + $0x8] sm:$0xff] 0.0
  $region17: #{decoder_forward.19} parent=0 // pred_fallthru
    _
  %v21 = vld [vmem:[#allocation2] sm:$0xff]
  %v22 = vld [vmem:[#allocation2 + $0x8] sm:$0xff]
  %v23 = vld [vmem:[%s0] sm:$0xf]
  %v24 = vld [vmem:[%s0 + $0x4] sm:$0xf]
  %v25 = vld [vmem:[%s1] sm:$0xf]
  %v26 = vld [vmem:[%s1 + $0x4] sm:$0xf]
  %v27 = vld [vmem:[%s1 + $0x8] sm:$0xf]
  %v28 = vld [vmem:[%s1 + $0xc] sm:$0xf]
  %v31 = vunpack.c.l.b16 %v23
  %v32 = vunpack.c.l.b16 %v24
  %v33 = vpack.c.b16 %v32, %v31
  %v38 = vunpack.c.l.b16 %v25
  %v39 = vunpack.c.l.b16 %v26
  %v40 = vunpack.c.l.b16 %v27
  %v41 = vunpack.c.l.b16 %v28
  %v42 = vpack.c.b16 %v39, %v38
  %v43 = vpack.c.b16 %v41, %v40
  %vm46 = vcmask 261120
  %v48 = vsel %vm46, %v33, 0
  %50 = vmatprep.subr.bf16.mxu0 0
  %51 = vmatpush1.bf16.msra.mxu0 %v42
  %52 = vmatprep.subr.bf16.mxu0 0
  %53 = vmatpush1.bf16.msra.mxu0 %v43
  %54 = vmatprep.subr.bf16.mxu0 0
  %55 = vmatpush1.bf16.msra.mxu0 0
  %56 = vmatprep.subr.bf16.mxu0 0
  %57 = vmatpush1.bf16.msra.mxu0 0
  %58 = vmatprep.subr.bf16.mxu0 0
  %59 = vmatpush1.bf16.msra.mxu0 0
  %60 = vmatprep.subr.bf16.mxu0 0
  %61 = vmatpush1.bf16.msra.mxu0 0
  %62 = vmatprep.subr.bf16.mxu0 0
  %63 = vmatpush1.bf16.msra.mxu0 0
  %64 = vmatprep.subr.bf16.mxu0 0
  %65 = vmatpush1.bf16.msra.mxu0 0
  %66 = vmatprep.subr.bf16.mxu0 0
  %67 = vmatpush1.bf16.msra.mxu0 0
  %68 = vmatprep.subr.bf16.mxu0 0
  %69 = vmatpush1.bf16.msra.mxu0 0
  %70 = vmatprep.subr.bf16.mxu0 0
  %71 = vmatpush1.bf16.msra.mxu0 0
  %72 = vmatprep.subr.bf16.mxu0 0
  %73 = vmatpush1.bf16.msra.mxu0 0
  %74 = vmatprep.subr.bf16.mxu0 0
  %75 = vmatpush1.bf16.msra.mxu0 0
  %76 = vmatprep.subr.bf16.mxu0 0
  %77 = vmatpush1.bf16.msra.mxu0 0
  %78 = vmatprep.subr.bf16.mxu0 0
  %79 = vmatpush1.bf16.msra.mxu0 0
  %80 = vmatprep.subr.bf16.mxu0 0
  %81 = vmatpush1.bf16.msra.mxu0 0
  %82 = vmatprep.mubr.bf16.mxu0 0
  %83 = vmatmul.mubr.bf16.gmra.mrb[0].mxu0 %v48
  %v84 = vpop.f32.mrb[0].mxu0
  %v85 = vadd.f32 0.0, %v84
  %v86 = vpop.f32.mrb[0].mxu0
  %v87 = vpop.f32.mrb[0].mxu0
  %v88 = vadd.f32 0.0, %v87
  %v89 = vpop.f32.mrb[0].mxu0
  %90 = vdwg.mxu0
  %v91 = vadd.f32 %v21, %v85
  %v92 = vadd.f32 %v22, %v88
  %93 = vst [vmem:[#allocation2] sm:$0xff] %v91
  %94 = vst [vmem:[#allocation2 + $0x8] sm:$0xff] %v92
  // Predicated region
  $region18: #{decoder_forward.19} parent=0 // pred_check
    %p95 = pneg %p15
  $region19: #{decoder_forward.19} parent=0 // pred_check_branch
    %97 = sbr.rel (%p95) target = $region21
  $region20: #{decoder_forward.19} parent=0 // pred_region
    %v98 = vld [vmem:[#allocation2] sm:$0xff]
    %v99 = vld [vmem:[#allocation2 + $0x8] sm:$0xff]
    %v100 = vld [vmem:[%s2] sm:$0x1]
    %v102 = vlaneseq
    %v103 = vshrl.u32 %v102, 7
    %v104 = vsub.s32 0, %v103
    %v105 = vrot.slane %v100, %v104
    %v107 = vadd.f32 %v98, %v105
    %v108 = vadd.f32 %v99, %v105
    %v109 = vpack.c.bf16 %v108, %v107
    %v111 = vunpack.c.l.b16 %v109
    %v112 = vunpack.c.h.b16 %v109
    %v113 = vpack.c.b16 %v111, %v111
    %v114 = vpack.c.b16 %v112, %v112
    %117 = vst [vmem:[%s3] sm:$0xf] %v113
    %118 = vst [vmem:[%s3 + $0x4] sm:$0xf] %v114
  $region21: #{decoder_forward.19} parent=0 // pred_fallthru
    _
  // Predicated region
  $region22: #{decoder_forward.19} parent=0 // pred_check
    _
  $region23: #{decoder_forward.19} parent=0 // pred_check_branch
    %120 = sbr.rel (0) target = $region25
  $region24: #{decoder_forward.19} parent=0 // pred_region
    _
  $region25: #{decoder_forward.19} parent=0 // pred_fallthru
    _
  // Predicated region
  $region26: #{decoder_forward.19} parent=0 // pred_check
    _
  $region27: #{decoder_forward.19} parent=0 // pred_check_branch
    %122 = sbr.rel (0) target = $region29
  $region28: #{decoder_forward.19} parent=0 // pred_region
    _
  $region29: #{decoder_forward.19} parent=0 // pred_fallthru
    _

// kernel: decoder_forward.20
$region0: #{decoder_forward.20}
  #allocation0 [shape = 'u32[]', space=smem, size = 0x4, offset = 0x4, fixed_abs, tag = 'smem constant byte address 0x4 - core index']
  #allocation1 [shape = 'u32[144,128]{1,0:T(1,128)}', space=vmem, size = 0x12000, scoped, tag = 'internal scratch']
  %s0 = inlined_call_operand.vmem [shape: bf16[2,4,8,8], index: 0, kind: input, shape index: {}]
  %s1 = inlined_call_operand.vmem [shape: bf16[2,4,8,8], index: 1, kind: input, shape index: {}]
  %s2 = inlined_call_operand.vmem [shape: bf16[2,4,8,8], index: 2, kind: input, shape index: {}]
  %s3 = inlined_call_operand.vmem [shape: f32[2,8,8], index: 3, kind: input, shape index: {}]
  %s4 = inlined_call_operand.vmem [shape: bf16[2,8,32], index: 4, kind: output, shape index: {}]
  %s5 = sld [smem:[#allocation0]]
  $region49: #{decoder_forward.20} parent=0
    _
  %s7 = ssub.s32 1, %s5
  %s8 = scalar_select 0, %s7, %s5
  loop: start=0, step=1, limit=4
  $region2: #{decoder_forward.20} parent=0 // loop_pre_header
    _
  $region3: #{decoder_forward.20} parent=0 // loop_header
    %s10 = sphi 0, %s14
    %p11 = scmp.ge.s32.totalorder %s10, 4
    %s17 = sphi 0, %s29
    %s18 = sphi 0, %s25
    %s19 = sphi 0, %s17
    %s20 = sphi 0, %s18
    %s21 = sphi 0, %s19
    %s22 = sphi 0, %s20
    %s34 = sphi 0, %s36
    %s37 = sphi 0, %s34
    %s38 = sphi 0, %s37
    %s54 = sphi 0, %s38
    %s60 = sphi 0, %s62
    %s63 = sphi 0, %s60
    %s64 = sphi 0, %s63
    %s80 = sphi 0, %s64
    %s86 = sphi 0, %s88
    %s89 = sphi 0, %s86
    %s90 = sphi 0, %s89
    %s106 = sphi 0, %s90
    %s114 = sphi 0, %s116
    %s117 = sphi 0, %s114
    %s118 = sphi 0, %s117
    %s134 = sphi 0, %s118
    %s142 = sphi 0, %s144
    %s145 = sphi 0, %s142
    %s146 = sphi 0, %s145
    %s162 = sphi 0, %s146
  $region4: #{decoder_forward.20} parent=0 // loop_header_branch
    %13 = sbr.rel (%p11) target = $region8
  $region5: #{decoder_forward.20} parent=0 // loop_body
    %s15 = ssub.s32 %s10, 1
    %s16 = ssub.s32 %s10, 2
    %s23 = sadd.s32 1, %s18
    %p24 = scmp.ge.s32.totalorder %s23, 1
    %s25 = scalar_select %p24, 0, %s23
    %s26 = sadd.s32 1, %s17
    %s27 = scalar_select %p24, %s26, %s17
    %p28 = scmp.ge.s32.totalorder %s27, 2
    %s29 = scalar_select %p28, 0, %s27
    %s30 = ssub.s32 %s17, %s29
    %s31 = ssub.s32 %s18, %s25
    %s32 = sor.u32 %s30, %s31
    %p33 = scmp.eq.s32.totalorder %s32, 0
    %s35 = sadd.s32 %s34, 1
    %s36 = scalar_select %p33, %s34, %s35
    %p39 = pneg %p33
    %p40 = scmp.eq.s32.totalorder %s10, 1
    %p41 = por %p39, %p40
    %p42 = scmp.ne.s32.totalorder %s34, %s37
    %p43 = scmp.eq.s32.totalorder %s10, 0
    %p44 = por %p42, %p43
    %p45 = scmp.ne.s32.totalorder %s34, %s37
    %p46 = scmp.eq.s32.totalorder %s15, 1
    %p47 = por %p45, %p46
    %p48 = scmp.ne.s32.totalorder %s37, %s38
    %p49 = scmp.eq.s32.totalorder %s15, 0
    %p50 = por %p48, %p49
    %p51 = scmp.ne.s32.totalorder %s37, %s38
    %p52 = scmp.eq.s32.totalorder %s16, 1
    %p53 = por %p51, %p52
    %p55 = scmp.ne.s32.totalorder %s38, %s54
    %p56 = scmp.eq.s32.totalorder %s16, 0
    %p57 = por %p55, %p56
    %s58 = ssub.s32 %s17, %s29
    %p59 = scmp.eq.s32.totalorder %s58, 0
    %s61 = sadd.s32 %s60, 1
    %s62 = scalar_select %p59, %s60, %s61
    %p65 = pneg %p59
    %p66 = scmp.eq.s32.totalorder %s10, 1
    %p67 = por %p65, %p66
    %p68 = scmp.ne.s32.totalorder %s60, %s63
    %p69 = scmp.eq.s32.totalorder %s10, 0
    %p70 = por %p68, %p69
    %p71 = scmp.ne.s32.totalorder %s60, %s63
    %p72 = scmp.eq.s32.totalorder %s15, 1
    %p73 = por %p71, %p72
    %p74 = scmp.ne.s32.totalorder %s63, %s64
    %p75 = scmp.eq.s32.totalorder %s15, 0
    %p76 = por %p74, %p75
    %p77 = scmp.ne.s32.totalorder %s63, %s64
    %p78 = scmp.eq.s32.totalorder %s16, 1
    %p79 = por %p77, %p78
    %p81 = scmp.ne.s32.totalorder %s64, %s80
    %p82 = scmp.eq.s32.totalorder %s16, 0
    %p83 = por %p81, %p82
    %s84 = ssub.s32 %s17, %s29
    %p85 = scmp.eq.s32.totalorder %s84, 0
    %s87 = sadd.s32 %s86, 1
    %s88 = scalar_select %p85, %s86, %s87
    %p91 = pneg %p85
    %p92 = scmp.eq.s32.totalorder %s10, 1
    %p93 = por %p91, %p92
    %p94 = scmp.ne.s32.totalorder %s86, %s89
    %p95 = scmp.eq.s32.totalorder %s10, 0
    %p96 = por %p94, %p95
    %p97 = scmp.ne.s32.totalorder %s86, %s89
    %p98 = scmp.eq.s32.totalorder %s15, 1
    %p99 = por %p97, %p98
    %p100 = scmp.ne.s32.totalorder %s89, %s90
    %p101 = scmp.eq.s32.totalorder %s15, 0
    %p102 = por %p100, %p101
    %p103 = scmp.ne.s32.totalorder %s89, %s90
    %p104 = scmp.eq.s32.totalorder %s16, 1
    %p105 = por %p103, %p104
    %p107 = scmp.ne.s32.totalorder %s90, %s106
    %p108 = scmp.eq.s32.totalorder %s16, 0
    %p109 = por %p107, %p108
    %s110 = ssub.s32 %s17, %s29
    %s111 = ssub.s32 %s18, %s25
    %s112 = sor.u32 %s110, %s111
    %p113 = scmp.eq.s32.totalorder %s112, 0
    %s115 = sadd.s32 %s114, 1
    %s116 = scalar_select %p113, %s114, %s115
    %p119 = pneg %p113
    %p120 = scmp.eq.s32.totalorder %s10, 1
    %p121 = por %p119, %p120
    %p122 = scmp.ne.s32.totalorder %s114, %s117
    %p123 = scmp.eq.s32.totalorder %s10, 0
    %p124 = por %p122, %p123
    %p125 = scmp.ne.s32.totalorder %s114, %s117
    %p126 = scmp.eq.s32.totalorder %s15, 1
    %p127 = por %p125, %p126
    %p128 = scmp.ne.s32.totalorder %s117, %s118
    %p129 = scmp.eq.s32.totalorder %s15, 0
    %p130 = por %p128, %p129
    %p131 = scmp.ne.s32.totalorder %s117, %s118
    %p132 = scmp.eq.s32.totalorder %s16, 1
    %p133 = por %p131, %p132
    %p135 = scmp.ne.s32.totalorder %s118, %s134
    %p136 = scmp.eq.s32.totalorder %s16, 0
    %p137 = por %p135, %p136
    %s138 = ssub.s32 %s17, %s29
    %s139 = ssub.s32 %s18, %s25
    %s140 = sor.u32 %s138, %s139
    %p141 = scmp.eq.s32.totalorder %s140, 0
    %s143 = sadd.s32 %s142, 1
    %s144 = scalar_select %p141, %s142, %s143
    %p147 = pneg %p141
    %p148 = scmp.eq.s32.totalorder %s10, 1
    %p149 = por %p147, %p148
    %p150 = scmp.ne.s32.totalorder %s142, %s145
    %p151 = scmp.eq.s32.totalorder %s10, 0
    %p152 = por %p150, %p151
    %p153 = scmp.ne.s32.totalorder %s142, %s145
    %p154 = scmp.eq.s32.totalorder %s15, 1
    %p155 = por %p153, %p154
    %p156 = scmp.ne.s32.totalorder %s145, %s146
    %p157 = scmp.eq.s32.totalorder %s15, 0
    %p158 = por %p156, %p157
    %p159 = scmp.ne.s32.totalorder %s145, %s146
    %p160 = scmp.eq.s32.totalorder %s16, 1
    %p161 = por %p159, %p160
    %p163 = scmp.ne.s32.totalorder %s146, %s162
    %p164 = scmp.eq.s32.totalorder %s16, 0
    %p165 = por %p163, %p164
    %p166 = scmp.le.s32.totalorder 1, %s10
    %p167 = scmp.lt.s32.totalorder %s10, 3
    %p168 = pnand %p166, %p167
    %p169 = pneg %p168
    // Predicated region
    $region9: #{decoder_forward.20} parent=5 // pred_check
      _
    $region10: #{decoder_forward.20} parent=5 // pred_check_branch
      %171 = sbr.rel (%p168) target = $region12
    $region11: #{decoder_forward.20} parent=5 // pred_region
      %s172 = ssub.s32 %s10, 1
    $region12: #{decoder_forward.20} parent=5 // pred_fallthru
      _
    %p173 = scmp.lt.s32.totalorder %s10, 2
    // Predicated region
    $region13: #{decoder_forward.20} parent=5 // pred_check
      %p174 = pneg %p173
    $region14: #{decoder_forward.20} parent=5 // pred_check_branch
      %176 = sbr.rel (%p174) target = $region16
    $region15: #{decoder_forward.20} parent=5 // pred_region
      // Predicated region
      $region17: #{decoder_forward.20} parent=15 // pred_check
        %p177 = pneg %p44
      $region18: #{decoder_forward.20} parent=15 // pred_check_branch
        %179 = sbr.rel (%p177) target = $region20
      $region19: #{decoder_forward.20} parent=15 // pred_region
        %p180 = scmp.lt.s32.totalorder %s17, 1
        %s181 = scalar_select %p180, %s17, 1
        %p182 = scmp.lt.s32.totalorder %s18, 0
        %s183 = scalar_select %p182, %s18, 0
        %s184 = smul.addr %s181, 4
        %s185 = sadd.s32 %s183, %s184
        %s186 = smul.addr %s185, 4
        %s187 = scalar_lea.vmem %s0, %s186
      $region20: #{decoder_forward.20} parent=15 // pred_fallthru
        _
      // Predicated region
      $region21: #{decoder_forward.20} parent=15 // pred_check
        %p188 = pneg %p70
      $region22: #{decoder_forward.20} parent=15 // pred_check_branch
        %190 = sbr.rel (%p188) target = $region24
      $region23: #{decoder_forward.20} parent=15 // pred_region
        %p191 = scmp.lt.s32.totalorder %s17, 1
        %s192 = scalar_select %p191, %s17, 1
        %s193 = smul.addr %s192, 4
        %s194 = smul.addr %s193, 4
        %s195 = scalar_lea.vmem %s1, %s194
      $region24: #{decoder_forward.20} parent=15 // pred_fallthru
        _
      // Predicated region
      $region25: #{decoder_forward.20} parent=15 // pred_check
        %p196 = pneg %p96
      $region26: #{decoder_forward.20} parent=15 // pred_check_branch
        %198 = sbr.rel (%p196) target = $region28
      $region27: #{decoder_forward.20} parent=15 // pred_region
        %p199 = scmp.lt.s32.totalorder %s17, 1
        %s200 = scalar_select %p199, %s17, 1
        %s201 = smul.addr %s200, 4
        %s202 = smul.addr %s201, 4
        %s203 = scalar_lea.vmem %s2, %s202
      $region28: #{decoder_forward.20} parent=15 // pred_fallthru
        _
      // Predicated region
      $region29: #{decoder_forward.20} parent=15 // pred_check
        %p204 = pneg %p124
      $region30: #{decoder_forward.20} parent=15 // pred_check_branch
        %206 = sbr.rel (%p204) target = $region32
      $region31: #{decoder_forward.20} parent=15 // pred_region
        %p207 = scmp.lt.s32.totalorder %s17, 1
        %s208 = scalar_select %p207, %s17, 1
        %p209 = scmp.lt.s32.totalorder %s18, 0
        %s210 = scalar_select %p209, %s18, 0
        %s211 = sadd.s32 %s210, %s208
        %s212 = smul.addr %s211, 8
        %s213 = scalar_lea.vmem %s3, %s212
      $region32: #{decoder_forward.20} parent=15 // pred_fallthru
        _
    $region16: #{decoder_forward.20} parent=5 // pred_fallthru
      _
    %p214 = scmp.le.s32.totalorder 1, %s10
    %p215 = scmp.lt.s32.totalorder %s10, 3
    %p216 = pnand %p214, %p215
    %p217 = pneg %p216
    // Predicated region
    $region33: #{decoder_forward.20} parent=5 // pred_check
      _
    $region34: #{decoder_forward.20} parent=5 // pred_check_branch
      %219 = sbr.rel (%p216) target = $region36
    $region35: #{decoder_forward.20} parent=5 // pred_region
      %s220 = ssub.s32 %s10, 1
      %p221 = scmp.lt.s32.totalorder %s19, 1
      %s222 = scalar_select %p221, %s19, 1
      %p223 = scmp.lt.s32.totalorder %s20, 0
      %s224 = scalar_select %p223, %s20, 0
      %s225 = smul.addr %s222, 4
      %s226 = sadd.s32 %s224, %s225
      %s227 = smul.addr %s226, 4
      %s228 = scalar_lea.vmem %s0, %s227
      %p229 = pneg %p50
      %p230 = pneg %p47
      %p231 = scmp.lt.s32.totalorder %s19, 1
      %s232 = scalar_select %p231, %s19, 1
      %s233 = smul.addr %s232, 4
      %s234 = smul.addr %s233, 4
      %s235 = scalar_lea.vmem %s1, %s234
      %p236 = pneg %p76
      %p237 = pneg %p73
      %p238 = scmp.lt.s32.totalorder %s19, 1
      %s239 = scalar_select %p238, %s19, 1
      %s240 = smul.addr %s239, 4
      %s241 = smul.addr %s240, 4
      %s242 = scalar_lea.vmem %s2, %s241
      %p243 = pneg %p102
      %p244 = pneg %p99
      %p245 = scmp.lt.s32.totalorder %s19, 1
      %s246 = scalar_select %p245, %s19, 1
      %p247 = scmp.lt.s32.totalorder %s20, 0
      %s248 = scalar_select %p247, %s20, 0
      %s249 = sadd.s32 %s248, %s246
      %s250 = smul.addr %s249, 8
      %s251 = scalar_lea.vmem %s3, %s250
      %p252 = pneg %p130
      %p253 = pneg %p127
      %p254 = pneg %p158
      %p255 = pneg %p155
      %p256 = scmp.lt.s32.totalorder %s19, 1
      %s257 = scalar_select %p256, %s19, 1
      %p258 = scmp.lt.s32.totalorder %s20, 0
      %s259 = scalar_select %p258, %s20, 0
      %s260 = sadd.s32 %s259, %s257
      %s261 = smul.addr %s260, 4
      %s262 = scalar_lea.vmem %s4, %s261
      %p263 = scmp.lt.s32.totalorder %s19, 1
      %s264 = scalar_select %p263, %s19, 1
      %p265 = scmp.lt.s32.totalorder %s20, 0
      %s266 = scalar_select %p265, %s20, 0
      %s267 = smul.addr %s264, 4
      %s268 = sadd.s32 %s266, %s267
      %s269 = smul.addr %s268, 4
      %s270 = scalar_lea.vmem %s0, %s269
      %p271 = scmp.lt.s32.totalorder %s19, 1
      %s272 = scalar_select %p271, %s19, 1
      %s273 = smul.addr %s272, 4
      %s274 = smul.addr %s273, 4
      %s275 = scalar_lea.vmem %s1, %s274
      %p276 = scmp.lt.s32.totalorder %s19, 1
      %s277 = scalar_select %p276, %s19, 1
      %s278 = smul.addr %s277, 4
      %s279 = smul.addr %s278, 4
      %s280 = scalar_lea.vmem %s2, %s279
      %p281 = scmp.lt.s32.totalorder %s19, 1
      %s282 = scalar_select %p281, %s19, 1
      %p283 = scmp.lt.s32.totalorder %s20, 0
      %s284 = scalar_select %p283, %s20, 0
      %s285 = sadd.s32 %s284, %s282
      %s286 = smul.addr %s285, 8
      %s287 = scalar_lea.vmem %s3, %s286
      %p288 = scmp.lt.s32.totalorder %s19, 1
      %s289 = scalar_select %p288, %s19, 1
      %p290 = scmp.lt.s32.totalorder %s20, 0
      %s291 = scalar_select %p290, %s20, 0
      %s292 = sadd.s32 %s291, %s289
      %s293 = smul.addr %s292, 4
      %s294 = scalar_lea.vmem %s4, %s293
      %v296 = vld [vmem:[%s270] sm:$0xf]
      %v297 = vld [vmem:[%s270 + $0x4] sm:$0xf]
      %v298 = vld [vmem:[%s270 + $0x8] sm:$0xf]
      %v299 = vld [vmem:[%s270 + $0xc] sm:$0xf]
      %v300 = vld [vmem:[%s275] sm:$0xf]
      %v301 = vld [vmem:[%s275 + $0x4] sm:$0xf]
      %v302 = vld [vmem:[%s275 + $0x8] sm:$0xf]
      %v303 = vld [vmem:[%s275 + $0xc] sm:$0xf]
      %v304 = vld [vmem:[%s280] sm:$0xf]
      %v305 = vld [vmem:[%s280 + $0x4] sm:$0xf]
      %v306 = vld [vmem:[%s280 + $0x8] sm:$0xf]
      %v307 = vld [vmem:[%s280 + $0xc] sm:$0xf]
      %v308 = vld [vmem:[%s287] sm:$0xff]
      %vm309 = vcmask 64512
      %v311 = vsel %vm309, %v296, 0
      %v314 = vsel %vm309, %v300, 0
      %316 = vmatprep.subr.bf16.mxu0 0
      %317 = vmatpush1.bf16.xpose.msra.mxu0 %v314
      %318 = vmatprep.subr.bf16.mxu0 0
      %319 = vmatpush1.bf16.xpose.msra.mxu0 0
      %320 = vmatprep.subr.bf16.mxu0 0
      %321 = vmatpush1.bf16.xpose.msra.mxu0 0
      %322 = vmatprep.subr.bf16.mxu0 0
      %323 = vmatpush1.bf16.xpose.msra.mxu0 0
      %324 = vmatprep.subr.bf16.mxu0 0
      %325 = vmatpush1.bf16.xpose.msra.mxu0 0
      %326 = vmatprep.subr.bf16.mxu0 0
      %327 = vmatpush1.bf16.xpose.msra.mxu0 0
      %328 = vmatprep.subr.bf16.mxu0 0
      %329 = vmatpush1.bf16.xpose.msra.mxu0 0
      %330 = vmatprep.subr.bf16.mxu0 0
      %331 = vmatpush1.bf16.xpose.msra.mxu0 0
      %332 = vmatprep.subr.bf16.mxu0 0
      %333 = vmatpush1.bf16.xpose.msra.mxu0 0
      %334 = vmatprep.subr.bf16.mxu0 0
      %335 = vmatpush1.bf16.xpose.msra.mxu0 0
      %336 = vmatprep.subr.bf16.mxu0 0
      %337 = vmatpush1.bf16.xpose.msra.mxu0 0
      %338 = vmatprep.subr.bf16.mxu0 0
      %339 = vmatpush1.bf16.xpose.msra.mxu0 0
      %340 = vmatprep.subr.bf16.mxu0 0
      %341 = vmatpush1.bf16.xpose.msra.mxu0 0
      %342 = vmatprep.subr.bf16.mxu0 0
      %343 = vmatpush1.bf16.xpose.msra.mxu0 0
      %344 = vmatprep.subr.bf16.mxu0 0
      %345 = vmatpush1.bf16.xpose.msra.mxu0 0
      %346 = vmatprep.subr.bf16.mxu0 0
      %347 = vmatpush1.bf16.xpose.msra.mxu0 0
      %348 = vmatprep.mubr.bf16.mxu0 0
      %349 = vmatmul.mubr.bf16.gmra.mrb[0].mxu0 %v311
      %v350 = vpop.f32.mrb[0].mxu0
      %v351 = vadd.f32 %v308, %v350
      %v352 = vpop.f32.mrb[0].mxu0
      %v353 = vpop.f32.mrb[0].mxu0
      %v354 = vpop.f32.mrb[0].mxu0
      %355 = vdwg.mxu0
      %v357 = vsel %vm309, %v297, 0
      %v360 = vsel %vm309, %v301, 0
      %362 = vmatprep.subr.bf16.mxu0 0
      %363 = vmatpush1.bf16.xpose.msra.mxu0 %v360
      %364 = vmatprep.subr.bf16.mxu0 0
      %365 = vmatpush1.bf16.xpose.msra.mxu0 0
      %366 = vmatprep.subr.bf16.mxu0 0
      %367 = vmatpush1.bf16.xpose.msra.mxu0 0
      %368 = vmatprep.subr.bf16.mxu0 0
      %369 = vmatpush1.bf16.xpose.msra.mxu0 0
      %370 = vmatprep.subr.bf16.mxu0 0
      %371 = vmatpush1.bf16.xpose.msra.mxu0 0
      %372 = vmatprep.subr.bf16.mxu0 0
      %373 = vmatpush1.bf16.xpose.msra.mxu0 0
      %374 = vmatprep.subr.bf16.mxu0 0
      %375 = vmatpush1.bf16.xpose.msra.mxu0 0
      %376 = vmatprep.subr.bf16.mxu0 0
      %377 = vmatpush1.bf16.xpose.msra.mxu0 0
      %378 = vmatprep.subr.bf16.mxu0 0
      %379 = vmatpush1.bf16.xpose.msra.mxu0 0
      %380 = vmatprep.subr.bf16.mxu0 0
      %381 = vmatpush1.bf16.xpose.msra.mxu0 0
      %382 = vmatprep.subr.bf16.mxu0 0
      %383 = vmatpush1.bf16.xpose.msra.mxu0 0
      %384 = vmatprep.subr.bf16.mxu0 0
      %385 = vmatpush1.bf16.xpose.msra.mxu0 0
      %386 = vmatprep.subr.bf16.mxu0 0
      %387 = vmatpush1.bf16.xpose.msra.mxu0 0
      %388 = vmatprep.subr.bf16.mxu0 0
      %389 = vmatpush1.bf16.xpose.msra.mxu0 0
      %390 = vmatprep.subr.bf16.mxu0 0
      %391 = vmatpush1.bf16.xpose.msra.mxu0 0
      %392 = vmatprep.subr.bf16.mxu0 0
      %393 = vmatpush1.bf16.xpose.msra.mxu0 0
      %394 = vmatprep.mubr.bf16.mxu0 0
      %395 = vmatmul.mubr.bf16.gmra.mrb[0].mxu0 %v357
      %v396 = vpop.f32.mrb[0].mxu0
      %v397 = vadd.f32 %v308, %v396
      %v398 = vpop.f32.mrb[0].mxu0
      %v399 = vpop.f32.mrb[0].mxu0
      %v400 = vpop.f32.mrb[0].mxu0
      %401 = vdwg.mxu0
      %v403 = vsel %vm309, %v298, 0
      %v406 = vsel %vm309, %v302, 0
      %408 = vmatprep.subr.bf16.mxu0 0
      %409 = vmatpush1.bf16.xpose.msra.mxu0 %v406
      %410 = vmatprep.subr.bf16.mxu0 0
      %411 = vmatpush1.bf16.xpose.msra.mxu0 0
      %412 = vmatprep.subr.bf16.mxu0 0
      %413 = vmatpush1.bf16.xpose.msra.mxu0 0
      %414 = vmatprep.subr.bf16.mxu0 0
      %415 = vmatpush1.bf16.xpose.msra.mxu0 0
      %416 = vmatprep.subr.bf16.mxu0 0
      %417 = vmatpush1.bf16.xpose.msra.mxu0 0
      %418 = vmatprep.subr.bf16.mxu0 0
      %419 = vmatpush1.bf16.xpose.msra.mxu0 0
      %420 = vmatprep.subr.bf16.mxu0 0
      %421 = vmatpush1.bf16.xpose.msra.mxu0 0
      %422 = vmatprep.subr.bf16.mxu0 0
      %423 = vmatpush1.bf16.xpose.msra.mxu0 0
      %424 = vmatprep.subr.bf16.mxu0 0
      %425 = vmatpush1.bf16.xpose.msra.mxu0 0
      %426 = vmatprep.subr.bf16.mxu0 0
      %427 = vmatpush1.bf16.xpose.msra.mxu0 0
      %428 = vmatprep.subr.bf16.mxu0 0
      %429 = vmatpush1.bf16.xpose.msra.mxu0 0
      %430 = vmatprep.subr.bf16.mxu0 0
      %431 = vmatpush1.bf16.xpose.msra.mxu0 0
      %432 = vmatprep.subr.bf16.mxu0 0
      %433 = vmatpush1.bf16.xpose.msra.mxu0 0
      %434 = vmatprep.subr.bf16.mxu0 0
      %435 = vmatpush1.bf16.xpose.msra.mxu0 0
      %436 = vmatprep.subr.bf16.mxu0 0
      %437 = vmatpush1.bf16.xpose.msra.mxu0 0
      %438 = vmatprep.subr.bf16.mxu0 0
      %439 = vmatpush1.bf16.xpose.msra.mxu0 0
      %440 = vmatprep.mubr.bf16.mxu0 0
      %441 = vmatmul.mubr.bf16.gmra.mrb[0].mxu0 %v403
      %v442 = vpop.f32.mrb[0].mxu0
      %v443 = vadd.f32 %v308, %v442
      %v444 = vpop.f32.mrb[0].mxu0
      %v445 = vpop.f32.mrb[0].mxu0
      %v446 = vpop.f32.mrb[0].mxu0
      %447 = vdwg.mxu0
      %v449 = vsel %vm309, %v299, 0
      %v452 = vsel %vm309, %v303, 0
      %454 = vmatprep.subr.bf16.mxu0 0
      %455 = vmatpush1.bf16.xpose.msra.mxu0 %v452
      %456 = vmatprep.subr.bf16.mxu0 0
      %457 = vmatpush1.bf16.xpose.msra.mxu0 0
      %458 = vmatprep.subr.bf16.mxu0 0
      %459 = vmatpush1.bf16.xpose.msra.mxu0 0
      %460 = vmatprep.subr.bf16.mxu0 0
      %461 = vmatpush1.bf16.xpose.msra.mxu0 0
      %462 = vmatprep.subr.bf16.mxu0 0
      %463 = vmatpush1.bf16.xpose.msra.mxu0 0
      %464 = vmatprep.subr.bf16.mxu0 0
      %465 = vmatpush1.bf16.xpose.msra.mxu0 0
      %466 = vmatprep.subr.bf16.mxu0 0
      %467 = vmatpush1.bf16.xpose.msra.mxu0 0
      %468 = vmatprep.subr.bf16.mxu0 0
      %469 = vmatpush1.bf16.xpose.msra.mxu0 0
      %470 = vmatprep.subr.bf16.mxu0 0
      %471 = vmatpush1.bf16.xpose.msra.mxu0 0
      %472 = vmatprep.subr.bf16.mxu0 0
      %473 = vmatpush1.bf16.xpose.msra.mxu0 0
      %474 = vmatprep.subr.bf16.mxu0 0
      %475 = vmatpush1.bf16.xpose.msra.mxu0 0
      %476 = vmatprep.subr.bf16.mxu0 0
      %477 = vmatpush1.bf16.xpose.msra.mxu0 0
      %478 = vmatprep.subr.bf16.mxu0 0
      %479 = vmatpush1.bf16.xpose.msra.mxu0 0
      %480 = vmatprep.subr.bf16.mxu0 0
      %481 = vmatpush1.bf16.xpose.msra.mxu0 0
      %482 = vmatprep.subr.bf16.mxu0 0
      %483 = vmatpush1.bf16.xpose.msra.mxu0 0
      %484 = vmatprep.subr.bf16.mxu0 0
      %485 = vmatpush1.bf16.xpose.msra.mxu0 0
      %486 = vmatprep.mubr.bf16.mxu0 0
      %487 = vmatmul.mubr.bf16.gmra.mrb[0].mxu0 %v449
      %v488 = vpop.f32.mrb[0].mxu0
      %v489 = vadd.f32 %v308, %v488
      %v490 = vpop.f32.mrb[0].mxu0
      %v491 = vpop.f32.mrb[0].mxu0
      %v492 = vpop.f32.mrb[0].mxu0
      %493 = vdwg.mxu0
      %v494 = vsel %vm309, %v351, -inf
      %495 = vmax.xlane.f32.xlu0 %v494
      %v496 = vpop.xlane.xlu0 %495
      %v497 = vsel %vm309, %v397, -inf
      %498 = vmax.xlane.f32.xlu0 %v497
      %v499 = vpop.xlane.xlu0 %498
      %v500 = vsel %vm309, %v443, -inf
      %501 = vmax.xlane.f32.xlu0 %v500
      %v502 = vpop.xlane.xlu0 %501
      %v503 = vsel %vm309, %v489, -inf
      %504 = vmax.xlane.f32.xlu0 %v503
      %v505 = vpop.xlane.xlu0 %504
      %v506 = vsub.f32 %v351, %v496
      %v507 = vsub.f32 %v397, %v499
      %v508 = vsub.f32 %v443, %v502
      %v509 = vsub.f32 %v489, %v505
      %v510 = vmul.f32 %v506, 1.442695
      %v511 = vpow.pop %v510
      %v512 = vmul.f32 %v507, 1.442695
      %v513 = vpow.pop %v512
      %v514 = vmul.f32 %v508, 1.442695
      %v515 = vpow.pop %v514
      %v516 = vmul.f32 %v509, 1.442695
      %v517 = vpow.pop %v516
      %v518 = vsel %vm309, %v511, 0.0
      %519 = vadd.xlane.f32.xlu0 %v518
      %v520 = vpop.xlane.xlu0 %519
      %v521 = vsel %vm309, %v513, 0.0
      %522 = vadd.xlane.f32.xlu0 %v521
      %v523 = vpop.xlane.xlu0 %522
      %v524 = vsel %vm309, %v515, 0.0
      %525 = vadd.xlane.f32.xlu0 %v524
      %v526 = vpop.xlane.xlu0 %525
      %v527 = vsel %vm309, %v517, 0.0
      %528 = vadd.xlane.f32.xlu0 %v527
      %v529 = vpop.xlane.xlu0 %528
      %v530 = vrcp.pop %v520
      %v531 = vrcp.pop %v523
      %v532 = vrcp.pop %v526
      %v533 = vrcp.pop %v529
      %v534 = vmul.f32 %v511, %v530
      %v535 = vmul.f32 %v513, %v531
      %v536 = vmul.f32 %v515, %v532
      %v537 = vmul.f32 %v517, %v533
      %v538 = vpack.c.bf16 %v534, %v534
      %v539 = vpack.c.bf16 %v535, %v535
      %v540 = vpack.c.bf16 %v536, %v536
      %v541 = vpack.c.bf16 %v537, %v537
      %v543 = vsel %vm309, %v538, 0
      %vm545 = vcmask 1043456
      %v547 = vsel %vm545, %v304, 0
      %549 = vmatprep.subr.bf16.mxu0 0
      %550 = vmatpush1.bf16.msra.mxu0 %v547
      %551 = vmatprep.subr.bf16.mxu0 0
      %552 = vmatpush1.bf16.msra.mxu0 0
      %553 = vmatprep.subr.bf16.mxu0 0
      %554 = vmatpush1.bf16.msra.mxu0 0
      %555 = vmatprep.subr.bf16.mxu0 0
      %556 = vmatpush1.bf16.msra.mxu0 0
      %557 = vmatprep.subr.bf16.mxu0 0
      %558 = vmatpush1.bf16.msra.mxu0 0
      %559 = vmatprep.subr.bf16.mxu0 0
      %560 = vmatpush1.bf16.msra.mxu0 0
      %561 = vmatprep.subr.bf16.mxu0 0
      %562 = vmatpush1.bf16.msra.mxu0 0
      %563 = vmatprep.subr.bf16.mxu0 0
      %564 = vmatpush1.bf16.msra.mxu0 0
      %565 = vmatprep.subr.bf16.mxu0 0
      %566 = vmatpush1.bf16.msra.mxu0 0
      %567 = vmatprep.subr.bf16.mxu0 0
      %568 = vmatpush1.bf16.msra.mxu0 0
      %569 = vmatprep.subr.bf16.mxu0 0
      %570 = vmatpush1.bf16.msra.mxu0 0
      %571 = vmatprep.subr.bf16.mxu0 0
      %572 = vmatpush1.bf16.msra.mxu0 0
      %573 = vmatprep.subr.bf16.mxu0 0
      %574 = vmatpush1.bf16.msra.mxu0 0
      %575 = vmatprep.subr.bf16.mxu0 0
      %576 = vmatpush1.bf16.msra.mxu0 0
      %577 = vmatprep.subr.bf16.mxu0 0
      %578 = vmatpush1.bf16.msra.mxu0 0
      %579 = vmatprep.subr.bf16.mxu0 0
      %580 = vmatpush1.bf16.msra.mxu0 0
      %581 = vmatprep.mubr.bf16.mxu0 0
      %582 = vmatmul.mubr.bf16.gmra.mrb[0].mxu0 %v543
      %v583 = vpop.f32.mrb[0].mxu0
      %v584 = vadd.f32 0.0, %v583
      %v585 = vpop.f32.mrb[0].mxu0
      %v586 = vpop.f32.mrb[0].mxu0
      %v587 = vpop.f32.mrb[0].mxu0
      %588 = vdwg.mxu0
      %v590 = vsel %vm309, %v539, 0
      %v593 = vsel %vm545, %v305, 0
      %595 = vmatprep.subr.bf16.mxu0 0
      %596 = vmatpush1.bf16.msra.mxu0 %v593
      %597 = vmatprep.subr.bf16.mxu0 0
      %598 = vmatpush1.bf16.msra.mxu0 0
      %599 = vmatprep.subr.bf16.mxu0 0
      %600 = vmatpush1.bf16.msra.mxu0 0
      %601 = vmatprep.subr.bf16.mxu0 0
      %602 = vmatpush1.bf16.msra.mxu0 0
      %603 = vmatprep.subr.bf16.mxu0 0
      %604 = vmatpush1.bf16.msra.mxu0 0
      %605 = vmatprep.subr.bf16.mxu0 0
      %606 = vmatpush1.bf16.msra.mxu0 0
      %607 = vmatprep.subr.bf16.mxu0 0
      %608 = vmatpush1.bf16.msra.mxu0 0
      %609 = vmatprep.subr.bf16.mxu0 0
      %610 = vmatpush1.bf16.msra.mxu0 0
      %611 = vmatprep.subr.bf16.mxu0 0
      %612 = vmatpush1.bf16.msra.mxu0 0
      %613 = vmatprep.subr.bf16.mxu0 0
      %614 = vmatpush1.bf16.msra.mxu0 0
      %615 = vmatprep.subr.bf16.mxu0 0
      %616 = vmatpush1.bf16.msra.mxu0 0
      %617 = vmatprep.subr.bf16.mxu0 0
      %618 = vmatpush1.bf16.msra.mxu0 0
      %619 = vmatprep.subr.bf16.mxu0 0
      %620 = vmatpush1.bf16.msra.mxu0 0
      %621 = vmatprep.subr.bf16.mxu0 0
      %622 = vmatpush1.bf16.msra.mxu0 0
      %623 = vmatprep.subr.bf16.mxu0 0
      %624 = vmatpush1.bf16.msra.mxu0 0
      %625 = vmatprep.subr.bf16.mxu0 0
      %626 = vmatpush1.bf16.msra.mxu0 0
      %627 = vmatprep.mubr.bf16.mxu0 0
      %628 = vmatmul.mubr.bf16.gmra.mrb[0].mxu0 %v590
      %v629 = vpop.f32.mrb[0].mxu0
      %v630 = vadd.f32 0.0, %v629
      %v631 = vpop.f32.mrb[0].mxu0
      %v632 = vpop.f32.mrb[0].mxu0
      %v633 = vpop.f32.mrb[0].mxu0
      %634 = vdwg.mxu0
      %v636 = vsel %vm309, %v540, 0
      %v639 = vsel %vm545, %v306, 0
      %641 = vmatprep.subr.bf16.mxu0 0
      %642 = vmatpush1.bf16.msra.mxu0 %v639
      %643 = vmatprep.subr.bf16.mxu0 0
      %644 = vmatpush1.bf16.msra.mxu0 0
      %645 = vmatprep.subr.bf16.mxu0 0
      %646 = vmatpush1.bf16.msra.mxu0 0
      %647 = vmatprep.subr.bf16.mxu0 0
      %648 = vmatpush1.bf16.msra.mxu0 0
      %649 = vmatprep.subr.bf16.mxu0 0
      %650 = vmatpush1.bf16.msra.mxu0 0
      %651 = vmatprep.subr.bf16.mxu0 0
      %652 = vmatpush1.bf16.msra.mxu0 0
      %653 = vmatprep.subr.bf16.mxu0 0
      %654 = vmatpush1.bf16.msra.mxu0 0
      %655 = vmatprep.subr.bf16.mxu0 0
      %656 = vmatpush1.bf16.msra.mxu0 0
      %657 = vmatprep.subr.bf16.mxu0 0
      %658 = vmatpush1.bf16.msra.mxu0 0
      %659 = vmatprep.subr.bf16.mxu0 0
      %660 = vmatpush1.bf16.msra.mxu0 0
      %661 = vmatprep.subr.bf16.mxu0 0
      %662 = vmatpush1.bf16.msra.mxu0 0
      %663 = vmatprep.subr.bf16.mxu0 0
      %664 = vmatpush1.bf16.msra.mxu0 0
      %665 = vmatprep.subr.bf16.mxu0 0
      %666 = vmatpush1.bf16.msra.mxu0 0
      %667 = vmatprep.subr.bf16.mxu0 0
      %668 = vmatpush1.bf16.msra.mxu0 0
      %669 = vmatprep.subr.bf16.mxu0 0
      %670 = vmatpush1.bf16.msra.mxu0 0
      %671 = vmatprep.subr.bf16.mxu0 0
      %672 = vmatpush1.bf16.msra.mxu0 0
      %673 = vmatprep.mubr.bf16.mxu0 0
      %674 = vmatmul.mubr.bf16.gmra.mrb[0].mxu0 %v636
      %v675 = vpop.f32.mrb[0].mxu0
      %v676 = vadd.f32 0.0, %v675
      %v677 = vpop.f32.mrb[0].mxu0
      %v678 = vpop.f32.mrb[0].mxu0
      %v679 = vpop.f32.mrb[0].mxu0
      %680 = vdwg.mxu0
      %v682 = vsel %vm309, %v541, 0
      %v685 = vsel %vm545, %v307, 0
      %687 = vmatprep.subr.bf16.mxu0 0
      %688 = vmatpush1.bf16.msra.mxu0 %v685
      %689 = vmatprep.subr.bf16.mxu0 0
      %690 = vmatpush1.bf16.msra.mxu0 0
      %691 = vmatprep.subr.bf16.mxu0 0
      %692 = vmatpush1.bf16.msra.mxu0 0
      %693 = vmatprep.subr.bf16.mxu0 0
      %694 = vmatpush1.bf16.msra.mxu0 0
      %695 = vmatprep.subr.bf16.mxu0 0
      %696 = vmatpush1.bf16.msra.mxu0 0
      %697 = vmatprep.subr.bf16.mxu0 0
      %698 = vmatpush1.bf16.msra.mxu0 0
      %699 = vmatprep.subr.bf16.mxu0 0
      %700 = vmatpush1.bf16.msra.mxu0 0
      %701 = vmatprep.subr.bf16.mxu0 0
      %702 = vmatpush1.bf16.msra.mxu0 0
      %703 = vmatprep.subr.bf16.mxu0 0
      %704 = vmatpush1.bf16.msra.mxu0 0
      %705 = vmatprep.subr.bf16.mxu0 0
      %706 = vmatpush1.bf16.msra.mxu0 0
      %707 = vmatprep.subr.bf16.mxu0 0
      %708 = vmatpush1.bf16.msra.mxu0 0
      %709 = vmatprep.subr.bf16.mxu0 0
      %710 = vmatpush1.bf16.msra.mxu0 0
      %711 = vmatprep.subr.bf16.mxu0 0
      %712 = vmatpush1.bf16.msra.mxu0 0
      %713 = vmatprep.subr.bf16.mxu0 0
      %714 = vmatpush1.bf16.msra.mxu0 0
      %715 = vmatprep.subr.bf16.mxu0 0
      %716 = vmatpush1.bf16.msra.mxu0 0
      %717 = vmatprep.subr.bf16.mxu0 0
      %718 = vmatpush1.bf16.msra.mxu0 0
      %719 = vmatprep.mubr.bf16.mxu0 0
      %720 = vmatmul.mubr.bf16.gmra.mrb[0].mxu0 %v682
      %v721 = vpop.f32.mrb[0].mxu0
      %v722 = vadd.f32 0.0, %v721
      %v723 = vpop.f32.mrb[0].mxu0
      %v724 = vpop.f32.mrb[0].mxu0
      %v725 = vpop.f32.mrb[0].mxu0
      %726 = vdwg.mxu0
      %728 = vrot.lane.b32.xlu0 %v630, 8
      %v729 = vpop.permute.xlu0 %728
      %732 = vrot.lane.b32.xlu0 %v676, 16
      %v733 = vpop.permute.xlu0 %732
      %736 = vrot.lane.b32.xlu0 %v722, 24
      %v737 = vpop.permute.xlu0 %736
      %v739 = vsel %vm309, %v584, %v729
      %vm740 = vcmask 130048
      %v741 = vsel %vm740, %v739, %v733
      %vm742 = vcmask 195584
      %v743 = vsel %vm742, %v741, %v737
      %v744 = vpack.c.bf16 %v743, %v743
      %vm745 = vcmask 257024
      %746 = vst.msk [vmem:[%s294] sm:$0xf] %vm745, %v744
      %p747 = scmp.lt.s32.totalorder %s19, 1
      %s748 = scalar_select %p747, %s19, 1
      %p749 = scmp.lt.s32.totalorder %s20, 0
      %s750 = scalar_select %p749, %s20, 0
      %s751 = sadd.s32 %s750, %s748
      %s752 = smul.addr %s751, 4
      %s753 = scalar_lea.vmem %s4, %s752
      // Predicated region
      $region37: #{decoder_forward.20} parent=35 // pred_check
        %p754 = pneg %p155
      $region38: #{decoder_forward.20} parent=35 // pred_check_branch
        %756 = sbr.rel (%p754) target = $region40
      $region39: #{decoder_forward.20} parent=35 // pred_region
        _
      $region40: #{decoder_forward.20} parent=35 // pred_fallthru
        _
    $region36: #{decoder_forward.20} parent=5 // pred_fallthru
      _
    %p757 = scmp.le.s32.totalorder 2, %s10
    // Predicated region
    $region41: #{decoder_forward.20} parent=5 // pred_check
      %p758 = pneg %p757
    $region42: #{decoder_forward.20} parent=5 // pred_check_branch
      %760 = sbr.rel (%p758) target = $region44
    $region43: #{decoder_forward.20} parent=5 // pred_region
      %s761 = ssub.s32 %s10, 2
      // Predicated region
      $region45: #{decoder_forward.20} parent=43 // pred_check
        %p762 = pneg %p161
      $region46: #{decoder_forward.20} parent=43 // pred_check_branch
        %764 = sbr.rel (%p762) target = $region48
      $region47: #{decoder_forward.20} parent=43 // pred_region
        %p765 = scmp.lt.s32.totalorder %s21, 1
        %s766 = scalar_select %p765, %s21, 1
        %p767 = scmp.lt.s32.totalorder %s22, 0
        %s768 = scalar_select %p767, %s22, 0
        %s769 = sadd.s32 %s768, %s766
        %s770 = smul.addr %s769, 4
        %s771 = scalar_lea.vmem %s4, %s770
      $region48: #{decoder_forward.20} parent=43 // pred_fallthru
        _
    $region44: #{decoder_forward.20} parent=5 // pred_fallthru
      _
  $region6: #{decoder_forward.20} parent=0 // loop_footer
    %s14 = sadd.s32 1, %s10
  $region7: #{decoder_forward.20} parent=0 // loop_footer_branch
    %9 = sbr.rel target = $region3
  $region8: #{decoder_forward.20} parent=0 // loop_exit
    _

// kernel: decoder_forward.21
$region0: #{decoder_forward.21}
  #allocation0 [shape = 'u32[]', space=smem, size = 0x4, offset = 0x4, fixed_abs, tag = 'smem constant byte address 0x4 - core index']
  #allocation1 [shape = 'u32[144,128]{1,0:T(1,128)}', space=vmem, size = 0x12000, scoped, tag = 'internal scratch']
  #allocation2 [shape = 'f32[16,32]{1,0:T(8,128)}', space=vmem, size = 0x2000, scoped, tag = 'scratch operand']
  %s0 = inlined_call_operand.vmem [shape: bf16[16,32], index: 0, kind: input, shape index: {}]
  %s1 = inlined_call_operand.vmem [shape: bf16[32,32], index: 1, kind: input, shape index: {}]
  %s2 = inlined_call_operand.vmem [shape: f32[1,32], index: 2, kind: input, shape index: {}]
  %s3 = inlined_call_operand.vmem [shape: f32[16,32], index: 3, kind: input, shape index: {}]
  %s4 = inlined_call_operand.vmem [shape: f32[1,32], index: 4, kind: input, shape index: {}]
  %s5 = inlined_call_operand.vmem [shape: f32[1,32], index: 5, kind: input, shape index: {}]
  %s6 = inlined_call_operand.vmem [shape: f32[16,32], index: 6, kind: output, shape index: {}]
  %s7 = sld [smem:[#allocation0]]
  $region42: #{decoder_forward.21} parent=0
    _
  %s9 = ssub.s32 1, %s7
  %s10 = scalar_select 0, %s9, %s7
  // Predicated region
  $region2: #{decoder_forward.21} parent=0 // pred_check
    _
  $region3: #{decoder_forward.21} parent=0 // pred_check_branch
    %12 = sbr.rel (0) target = $region5
  $region4: #{decoder_forward.21} parent=0 // pred_region
    _
  $region5: #{decoder_forward.21} parent=0 // pred_fallthru
    _
  // Predicated region
  $region6: #{decoder_forward.21} parent=0 // pred_check
    _
  $region7: #{decoder_forward.21} parent=0 // pred_check_branch
    %14 = sbr.rel (0) target = $region9
  $region8: #{decoder_forward.21} parent=0 // pred_region
    _
  $region9: #{decoder_forward.21} parent=0 // pred_fallthru
    _
  // Predicated region
  $region10: #{decoder_forward.21} parent=0 // pred_check
    _
  $region11: #{decoder_forward.21} parent=0 // pred_check_branch
    %16 = sbr.rel (0) target = $region13
  $region12: #{decoder_forward.21} parent=0 // pred_region
    _
  $region13: #{decoder_forward.21} parent=0 // pred_fallthru
    _
  // Predicated region
  $region14: #{decoder_forward.21} parent=0 // pred_check
    _
  $region15: #{decoder_forward.21} parent=0 // pred_check_branch
    %18 = sbr.rel (0) target = $region17
  $region16: #{decoder_forward.21} parent=0 // pred_region
    _
  $region17: #{decoder_forward.21} parent=0 // pred_fallthru
    _
  // Predicated region
  $region18: #{decoder_forward.21} parent=0 // pred_check
    _
  $region19: #{decoder_forward.21} parent=0 // pred_check_branch
    %20 = sbr.rel (0) target = $region21
  $region20: #{decoder_forward.21} parent=0 // pred_region
    _
  $region21: #{decoder_forward.21} parent=0 // pred_fallthru
    _
  // Predicated region
  $region22: #{decoder_forward.21} parent=0 // pred_check
    _
  $region23: #{decoder_forward.21} parent=0 // pred_check_branch
    %22 = sbr.rel (0) target = $region25
  $region24: #{decoder_forward.21} parent=0 // pred_region
    _
  $region25: #{decoder_forward.21} parent=0 // pred_fallthru
    _
  %p24 = scmp.eq.s32.totalorder 0, 0
  // Predicated region
  $region26: #{decoder_forward.21} parent=0 // pred_check
    %p25 = pneg %p24
  $region27: #{decoder_forward.21} parent=0 // pred_check_branch
    %27 = sbr.rel (%p25) target = $region29
  $region28: #{decoder_forward.21} parent=0 // pred_region
    %vm28 = vcmask 261120
    %29 = vst.msk [vmem:[#allocation2] sm:$0xff] %vm28, 0.0
    %30 = vst.msk [vmem:[#allocation2 + $0x8] sm:$0xff] %vm28, 0.0
  $region29: #{decoder_forward.21} parent=0 // pred_fallthru
    _
  %v31 = vld [vmem:[#allocation2] sm:$0xff]
  %v32 = vld [vmem:[#allocation2 + $0x8] sm:$0xff]
  %v33 = vld [vmem:[%s0] sm:$0xf]
  %v34 = vld [vmem:[%s0 + $0x4] sm:$0xf]
  %v35 = vld [vmem:[%s1] sm:$0xf]
  %v36 = vld [vmem:[%s1 + $0x4] sm:$0xf]
  %v37 = vld [vmem:[%s1 + $0x8] sm:$0xf]
  %v38 = vld [vmem:[%s1 + $0xc] sm:$0xf]
  %v41 = vunpack.c.l.b16 %v33
  %v42 = vunpack.c.l.b16 %v34
  %v43 = vpack.c.b16 %v42, %v41
  %v48 = vunpack.c.l.b16 %v35
  %v49 = vunpack.c.l.b16 %v36
  %v50 = vunpack.c.l.b16 %v37
  %v51 = vunpack.c.l.b16 %v38
  %v52 = vpack.c.b16 %v49, %v48
  %v53 = vpack.c.b16 %v51, %v50
  %vm56 = vcmask 261120
  %v58 = vsel %vm56, %v43, 0
  %60 = vmatprep.subr.bf16.mxu0 0
  %61 = vmatpush1.bf16.msra.mxu0 %v52
  %62 = vmatprep.subr.bf16.mxu0 0
  %63 = vmatpush1.bf16.msra.mxu0 %v53
  %64 = vmatprep.subr.bf16.mxu0 0
  %65 = vmatpush1.bf16.msra.mxu0 0
  %66 = vmatprep.subr.bf16.mxu0 0
  %67 = vmatpush1.bf16.msra.mxu0 0
  %68 = vmatprep.subr.bf16.mxu0 0
  %69 = vmatpush1.bf16.msra.mxu0 0
  %70 = vmatprep.subr.bf16.mxu0 0
  %71 = vmatpush1.bf16.msra.mxu0 0
  %72 = vmatprep.subr.bf16.mxu0 0
  %73 = vmatpush1.bf16.msra.mxu0 0
  %74 = vmatprep.subr.bf16.mxu0 0
  %75 = vmatpush1.bf16.msra.mxu0 0
  %76 = vmatprep.subr.bf16.mxu0 0
  %77 = vmatpush1.bf16.msra.mxu0 0
  %78 = vmatprep.subr.bf16.mxu0 0
  %79 = vmatpush1.bf16.msra.mxu0 0
  %80 = vmatprep.subr.bf16.mxu0 0
  %81 = vmatpush1.bf16.msra.mxu0 0
  %82 = vmatprep.subr.bf16.mxu0 0
  %83 = vmatpush1.bf16.msra.mxu0 0
  %84 = vmatprep.subr.bf16.mxu0 0
  %85 = vmatpush1.bf16.msra.mxu0 0
  %86 = vmatprep.subr.bf16.mxu0 0
  %87 = vmatpush1.bf16.msra.mxu0 0
  %88 = vmatprep.subr.bf16.mxu0 0
  %89 = vmatpush1.bf16.msra.mxu0 0
  %90 = vmatprep.subr.bf16.mxu0 0
  %91 = vmatpush1.bf16.msra.mxu0 0
  %92 = vmatprep.mubr.bf16.mxu0 0
  %93 = vmatmul.mubr.bf16.gmra.mrb[0].mxu0 %v58
  %v94 = vpop.f32.mrb[0].mxu0
  %v95 = vadd.f32 0.0, %v94
  %v96 = vpop.f32.mrb[0].mxu0
  %v97 = vpop.f32.mrb[0].mxu0
  %v98 = vadd.f32 0.0, %v97
  %v99 = vpop.f32.mrb[0].mxu0
  %100 = vdwg.mxu0
  %v101 = vadd.f32 %v31, %v95
  %v102 = vadd.f32 %v32, %v98
  %103 = vst.msk [vmem:[#allocation2] sm:$0xff] %vm56, %v101
  %104 = vst.msk [vmem:[#allocation2 + $0x8] sm:$0xff] %vm56, %v102
  // Predicated region
  $region30: #{decoder_forward.21} parent=0 // pred_check
    %p105 = pneg %p24
  $region31: #{decoder_forward.21} parent=0 // pred_check_branch
    %107 = sbr.rel (%p105) target = $region33
  $region32: #{decoder_forward.21} parent=0 // pred_region
    %v108 = vld [vmem:[#allocation2] sm:$0xff]
    %v109 = vld [vmem:[#allocation2 + $0x8] sm:$0xff]
    %v110 = vld [vmem:[%s2] sm:$0x1]
    %v112 = vlaneseq
    %v113 = vshrl.u32 %v112, 7
    %v114 = vsub.s32 0, %v113
    %v115 = vrot.slane %v110, %v114
    %v117 = vadd.f32 %v108, %v115
    %v118 = vadd.f32 %v109, %v115
    %v119 = vld [vmem:[%s3] sm:$0xff]
    %v120 = vld [vmem:[%s3 + $0x8] sm:$0xff]
    %v121 = vadd.f32 %v117, %v119
    %v122 = vadd.f32 %v118, %v120
    %v123 = vsel %vm56, %v121, 0.0
    %124 = vadd.xlane.f32.xlu0 %v123
    %v125 = vpop.xlane.xlu0 %124
    %v126 = vsel %vm56, %v122, 0.0
    %127 = vadd.xlane.f32.xlu0 %v126
    %v128 = vpop.xlane.xlu0 %127
    %v129 = vrcp.pop 32.0
    %v130 = vmul.f32 %v125, %v129
    %v131 = vmul.f32 %v128, %v129
    %v132 = vsub.f32 %v121, %v130
    %v133 = vsub.f32 %v122, %v131
    %v134 = vmul.f32 %v132, %v132
    %v135 = vmul.f32 %v133, %v133
    %v136 = vsel %vm56, %v134, 0.0
    %137 = vadd.xlane.f32.xlu0 %v136
    %v138 = vpop.xlane.xlu0 %137
    %v139 = vsel %vm56, %v135, 0.0
    %140 = vadd.xlane.f32.xlu0 %v139
    %v141 = vpop.xlane.xlu0 %140
    %v142 = vmul.f32 %v138, 0.032258064
    %v143 = vmul.f32 %v141, 0.032258064
    %v144 = vrsqrt.pop %v142
    %v145 = vmul.f32 %v142, %v144
    %vm146 = vcmp.eq.f32.partialorder %v142, inf
    %v147 = vsel %vm146, %v142, %v145
    %vm148 = vcmp.eq.f32.partialorder %v142, 0.0
    %v149 = vand.u32 %v142, 2147483648
    %v150 = vsel %vm148, %v149, %v147
    %v151 = vrsqrt.pop %v143
    %v152 = vmul.f32 %v143, %v151
    %vm153 = vcmp.eq.f32.partialorder %v143, inf
    %v154 = vsel %vm153, %v143, %v152
    %vm155 = vcmp.eq.f32.partialorder %v143, 0.0
    %v156 = vand.u32 %v143, 2147483648
    %v157 = vsel %vm155, %v156, %v154
    %v158 = vadd.f32 %v150, 1e-12
    %v159 = vadd.f32 %v157, 1e-12
    %v160 = vrcp.pop %v158
    %v161 = vmul.f32 %v132, %v160
    %v162 = vrcp.pop %v159
    %v163 = vmul.f32 %v133, %v162
    %v164 = vld [vmem:[%s4] sm:$0x1]
    %v166 = vlaneseq
    %v167 = vshrl.u32 %v166, 7
    %v168 = vsub.s32 0, %v167
    %v169 = vrot.slane %v164, %v168
    %v171 = vmul.f32 %v169, %v161
    %v172 = vmul.f32 %v169, %v163
    %v173 = vld [vmem:[%s5] sm:$0x1]
    %v175 = vlaneseq
    %v176 = vshrl.u32 %v175, 7
    %v177 = vsub.s32 0, %v176
    %v178 = vrot.slane %v173, %v177
    %v180 = vadd.f32 %v171, %v178
    %v181 = vadd.f32 %v172, %v178
    %182 = vst.msk [vmem:[%s6] sm:$0xff] %vm56, %v180
    %183 = vst.msk [vmem:[%s6 + $0x8] sm:$0xff] %vm56, %v181
  $region33: #{decoder_forward.21} parent=0 // pred_fallthru
    _
  // Predicated region
  $region34: #{decoder_forward.21} parent=0 // pred_check
    _
  $region35: #{decoder_forward.21} parent=0 // pred_check_branch
    %185 = sbr.rel (0) target = $region37
  $region36: #{decoder_forward.21} parent=0 // pred_region
    _
  $region37: #{decoder_forward.21} parent=0 // pred_fallthru
    _
  // Predicated region
  $region38: #{decoder_forward.21} parent=0 // pred_check
    _
  $region39: #{decoder_forward.21} parent=0 // pred_check_branch
    %187 = sbr.rel (0) target = $region41
  $region40: #{decoder_forward.21} parent=0 // pred_region
    _
  $region41: #{decoder_forward.21} parent=0 // pred_fallthru
    _

// kernel: decoder_forward.37
$region0: #{decoder_forward.37}
  #allocation0 [shape = 'u32[]', space=smem, size = 0x4, offset = 0x4, fixed_abs, tag = 'smem constant byte address 0x4 - core index']
  #allocation1 [shape = 'u32[144,128]{1,0:T(1,128)}', space=vmem, size = 0x12000, scoped, tag = 'internal scratch']
  #allocation2 [shape = 'f32[16,128]{1,0:T(8,128)}', space=vmem, size = 0x2000, scoped, tag = 'scratch operand']
  %s0 = inlined_call_operand.vmem [shape: bf16[16,32], index: 0, kind: input, shape index: {}]
  %s1 = inlined_call_operand.vmem [shape: bf16[32,128], index: 1, kind: input, shape index: {}]
  %s2 = inlined_call_operand.vmem [shape: f32[1,128], index: 2, kind: input, shape index: {}]
  %s3 = inlined_call_operand.vmem [shape: f32[16,128], index: 3, kind: output, shape index: {}]
  %s4 = sld [smem:[#allocation0]]
  $region30: #{decoder_forward.37} parent=0
    _
  %s6 = ssub.s32 1, %s4
  %s7 = scalar_select 0, %s6, %s4
  // Predicated region
  $region2: #{decoder_forward.37} parent=0 // pred_check
    _
  $region3: #{decoder_forward.37} parent=0 // pred_check_branch
    %9 = sbr.rel (0) target = $region5
  $region4: #{decoder_forward.37} parent=0 // pred_region
    _
  $region5: #{decoder_forward.37} parent=0 // pred_fallthru
    _
  // Predicated region
  $region6: #{decoder_forward.37} parent=0 // pred_check
    _
  $region7: #{decoder_forward.37} parent=0 // pred_check_branch
    %11 = sbr.rel (0) target = $region9
  $region8: #{decoder_forward.37} parent=0 // pred_region
    _
  $region9: #{decoder_forward.37} parent=0 // pred_fallthru
    _
  // Predicated region
  $region10: #{decoder_forward.37} parent=0 // pred_check
    _
  $region11: #{decoder_forward.37} parent=0 // pred_check_branch
    %13 = sbr.rel (0) target = $region13
  $region12: #{decoder_forward.37} parent=0 // pred_region
    _
  $region13: #{decoder_forward.37} parent=0 // pred_fallthru
    _
  %p15 = scmp.eq.s32.totalorder 0, 0
  // Predicated region
  $region14: #{decoder_forward.37} parent=0 // pred_check
    %p16 = pneg %p15
  $region15: #{decoder_forward.37} parent=0 // pred_check_branch
    %18 = sbr.rel (%p16) target = $region17
  $region16: #{decoder_forward.37} parent=0 // pred_region
    %19 = vst [vmem:[#allocation2] sm:$0xff] 0.0
    %20 = vst [vmem:[#allocation2 + $0x8] sm:$0xff] 0.0
  $region17: #{decoder_forward.37} parent=0 // pred_fallthru
    _
  %v21 = vld [vmem:[#allocation2] sm:$0xff]
  %v22 = vld [vmem:[#allocation2 + $0x8] sm:$0xff]
  %v23 = vld [vmem:[%s0] sm:$0xf]
  %v24 = vld [vmem:[%s0 + $0x4] sm:$0xf]
  %v25 = vld [vmem:[%s1] sm:$0xf]
  %v26 = vld [vmem:[%s1 + $0x4] sm:$0xf]
  %v27 = vld [vmem:[%s1 + $0x8] sm:$0xf]
  %v28 = vld [vmem:[%s1 + $0xc] sm:$0xf]
  %v31 = vunpack.c.l.b16 %v23
  %v32 = vunpack.c.l.b16 %v24
  %v33 = vpack.c.b16 %v32, %v31
  %v38 = vunpack.c.l.b16 %v25
  %v39 = vunpack.c.l.b16 %v26
  %v40 = vunpack.c.l.b16 %v27
  %v41 = vunpack.c.l.b16 %v28
  %v42 = vpack.c.b16 %v39, %v38
  %v43 = vpack.c.b16 %v41, %v40
  %vm46 = vcmask 261120
  %v48 = vsel %vm46, %v33, 0
  %50 = vmatprep.subr.bf16.mxu0 0
  %51 = vmatpush1.bf16.msra.mxu0 %v42
  %52 = vmatprep.subr.bf16.mxu0 0
  %53 = vmatpush1.bf16.msra.mxu0 %v43
  %54 = vmatprep.subr.bf16.mxu0 0
  %55 = vmatpush1.bf16.msra.mxu0 0
  %56 = vmatprep.subr.bf16.mxu0 0
  %57 = vmatpush1.bf16.msra.mxu0 0
  %58 = vmatprep.subr.bf16.mxu0 0
  %59 = vmatpush1.bf16.msra.mxu0 0
  %60 = vmatprep.subr.bf16.mxu0 0
  %61 = vmatpush1.bf16.msra.mxu0 0
  %62 = vmatprep.subr.bf16.mxu0 0
  %63 = vmatpush1.bf16.msra.mxu0 0
  %64 = vmatprep.subr.bf16.mxu0 0
  %65 = vmatpush1.bf16.msra.mxu0 0
  %66 = vmatprep.subr.bf16.mxu0 0
  %67 = vmatpush1.bf16.msra.mxu0 0
  %68 = vmatprep.subr.bf16.mxu0 0
  %69 = vmatpush1.bf16.msra.mxu0 0
  %70 = vmatprep.subr.bf16.mxu0 0
  %71 = vmatpush1.bf16.msra.mxu0 0
  %72 = vmatprep.subr.bf16.mxu0 0
  %73 = vmatpush1.bf16.msra.mxu0 0
  %74 = vmatprep.subr.bf16.mxu0 0
  %75 = vmatpush1.bf16.msra.mxu0 0
  %76 = vmatprep.subr.bf16.mxu0 0
  %77 = vmatpush1.bf16.msra.mxu0 0
  %78 = vmatprep.subr.bf16.mxu0 0
  %79 = vmatpush1.bf16.msra.mxu0 0
  %80 = vmatprep.subr.bf16.mxu0 0
  %81 = vmatpush1.bf16.msra.mxu0 0
  %82 = vmatprep.mubr.bf16.mxu0 0
  %83 = vmatmul.mubr.bf16.gmra.mrb[0].mxu0 %v48
  %v84 = vpop.f32.mrb[0].mxu0
  %v85 = vadd.f32 0.0, %v84
  %v86 = vpop.f32.mrb[0].mxu0
  %v87 = vpop.f32.mrb[0].mxu0
  %v88 = vadd.f32 0.0, %v87
  %v89 = vpop.f32.mrb[0].mxu0
  %90 = vdwg.mxu0
  %v91 = vadd.f32 %v21, %v85
  %v92 = vadd.f32 %v22, %v88
  %93 = vst [vmem:[#allocation2] sm:$0xff] %v91
  %94 = vst [vmem:[#allocation2 + $0x8] sm:$0xff] %v92
  // Predicated region
  $region18: #{decoder_forward.37} parent=0 // pred_check
    %p95 = pneg %p15
  $region19: #{decoder_forward.37} parent=0 // pred_check_branch
    %97 = sbr.rel (%p95) target = $region21
  $region20: #{decoder_forward.37} parent=0 // pred_region
    %v98 = vld [vmem:[#allocation2] sm:$0xff]
    %v99 = vld [vmem:[#allocation2 + $0x8] sm:$0xff]
    %v100 = vld [vmem:[%s2] sm:$0x1]
    %v102 = vlaneseq
    %v103 = vshrl.u32 %v102, 7
    %v104 = vsub.s32 0, %v103
    %v105 = vrot.slane %v100, %v104
    %v107 = vadd.f32 %v98, %v105
    %v108 = vadd.f32 %v99, %v105
    %109 = vst [vmem:[%s3] sm:$0xff] %v107
    %110 = vst [vmem:[%s3 + $0x8] sm:$0xff] %v108
  $region21: #{decoder_forward.37} parent=0 // pred_fallthru
    _
  // Predicated region
  $region22: #{decoder_forward.37} parent=0 // pred_check
    _
  $region23: #{decoder_forward.37} parent=0 // pred_check_branch
    %112 = sbr.rel (0) target = $region25
  $region24: #{decoder_forward.37} parent=0 // pred_region
    _
  $region25: #{decoder_forward.37} parent=0 // pred_fallthru
    _
  // Predicated region
  $region26: #{decoder_forward.37} parent=0 // pred_check
    _
  $region27: #{decoder_forward.37} parent=0 // pred_check_branch
    %114 = sbr.rel (0) target = $region29
  $region28: #{decoder_forward.37} parent=0 // pred_region
    _
  $region29: #{decoder_forward.37} parent=0 // pred_fallthru
    _

// kernel: decoder_forward.27
$region0: #{decoder_forward.27}
  #allocation0 [shape = 'u32[]', space=smem, size = 0x4, offset = 0x4, fixed_abs, tag = 'smem constant byte address 0x4 - core index']
  #allocation1 [shape = 'u32[144,128]{1,0:T(1,128)}', space=vmem, size = 0x12000, scoped, tag = 'internal scratch']
  #allocation2 [shape = 'f32[16,32]{1,0:T(8,128)}', space=vmem, size = 0x2000, scoped, tag = 'scratch operand']
  %s0 = inlined_call_operand.vmem [shape: bf16[16,128], index: 0, kind: input, shape index: {}]
  %s1 = inlined_call_operand.vmem [shape: bf16[128,32], index: 1, kind: input, shape index: {}]
  %s2 = inlined_call_operand.vmem [shape: f32[1,32], index: 2, kind: input, shape index: {}]
  %s3 = inlined_call_operand.vmem [shape: f32[16,32], index: 3, kind: input, shape index: {}]
  %s4 = inlined_call_operand.vmem [shape: f32[1,32], index: 4, kind: input, shape index: {}]
  %s5 = inlined_call_operand.vmem [shape: f32[1,32], index: 5, kind: input, shape index: {}]
  %s6 = inlined_call_operand.vmem [shape: f32[16,32], index: 6, kind: output, shape index: {}]
  %s7 = sld [smem:[#allocation0]]
  $region42: #{decoder_forward.27} parent=0
    _
  %s9 = ssub.s32 1, %s7
  %s10 = scalar_select 0, %s9, %s7
  // Predicated region
  $region2: #{decoder_forward.27} parent=0 // pred_check
    _
  $region3: #{decoder_forward.27} parent=0 // pred_check_branch
    %12 = sbr.rel (0) target = $region5
  $region4: #{decoder_forward.27} parent=0 // pred_region
    _
  $region5: #{decoder_forward.27} parent=0 // pred_fallthru
    _
  // Predicated region
  $region6: #{decoder_forward.27} parent=0 // pred_check
    _
  $region7: #{decoder_forward.27} parent=0 // pred_check_branch
    %14 = sbr.rel (0) target = $region9
  $region8: #{decoder_forward.27} parent=0 // pred_region
    _
  $region9: #{decoder_forward.27} parent=0 // pred_fallthru
    _
  // Predicated region
  $region10: #{decoder_forward.27} parent=0 // pred_check
    _
  $region11: #{decoder_forward.27} parent=0 // pred_check_branch
    %16 = sbr.rel (0) target = $region13
  $region12: #{decoder_forward.27} parent=0 // pred_region
    _
  $region13: #{decoder_forward.27} parent=0 // pred_fallthru
    _
  // Predicated region
  $region14: #{decoder_forward.27} parent=0 // pred_check
    _
  $region15: #{decoder_forward.27} parent=0 // pred_check_branch
    %18 = sbr.rel (0) target = $region17
  $region16: #{decoder_forward.27} parent=0 // pred_region
    _
  $region17: #{decoder_forward.27} parent=0 // pred_fallthru
    _
  // Predicated region
  $region18: #{decoder_forward.27} parent=0 // pred_check
    _
  $region19: #{decoder_forward.27} parent=0 // pred_check_branch
    %20 = sbr.rel (0) target = $region21
  $region20: #{decoder_forward.27} parent=0 // pred_region
    _
  $region21: #{decoder_forward.27} parent=0 // pred_fallthru
    _
  // Predicated region
  $region22: #{decoder_forward.27} parent=0 // pred_check
    _
  $region23: #{decoder_forward.27} parent=0 // pred_check_branch
    %22 = sbr.rel (0) target = $region25
  $region24: #{decoder_forward.27} parent=0 // pred_region
    _
  $region25: #{decoder_forward.27} parent=0 // pred_fallthru
    _
  %p24 = scmp.eq.s32.totalorder 0, 0
  // Predicated region
  $region26: #{decoder_forward.27} parent=0 // pred_check
    %p25 = pneg %p24
  $region27: #{decoder_forward.27} parent=0 // pred_check_branch
    %27 = sbr.rel (%p25) target = $region29
  $region28: #{decoder_forward.27} parent=0 // pred_region
    %vm28 = vcmask 261120
    %29 = vst.msk [vmem:[#allocation2] sm:$0xff] %vm28, 0.0
    %30 = vst.msk [vmem:[#allocation2 + $0x8] sm:$0xff] %vm28, 0.0
  $region29: #{decoder_forward.27} parent=0 // pred_fallthru
    _
  %v31 = vld [vmem:[#allocation2] sm:$0xff]
  %v32 = vld [vmem:[#allocation2 + $0x8] sm:$0xff]
  %v33 = vld [vmem:[%s0] sm:$0xf]
  %v34 = vld [vmem:[%s0 + $0x4] sm:$0xf]
  %v35 = vld [vmem:[%s1] sm:$0xf]
  %v36 = vld [vmem:[%s1 + $0x4] sm:$0xf]
  %v37 = vld [vmem:[%s1 + $0x8] sm:$0xf]
  %v38 = vld [vmem:[%s1 + $0xc] sm:$0xf]
  %v39 = vld [vmem:[%s1 + $0x10] sm:$0xf]
  %v40 = vld [vmem:[%s1 + $0x14] sm:$0xf]
  %v41 = vld [vmem:[%s1 + $0x18] sm:$0xf]
  %v42 = vld [vmem:[%s1 + $0x1c] sm:$0xf]
  %v43 = vld [vmem:[%s1 + $0x20] sm:$0xf]
  %v44 = vld [vmem:[%s1 + $0x24] sm:$0xf]
  %v45 = vld [vmem:[%s1 + $0x28] sm:$0xf]
  %v46 = vld [vmem:[%s1 + $0x2c] sm:$0xf]
  %v47 = vld [vmem:[%s1 + $0x30] sm:$0xf]
  %v48 = vld [vmem:[%s1 + $0x34] sm:$0xf]
  %v49 = vld [vmem:[%s1 + $0x38] sm:$0xf]
  %v50 = vld [vmem:[%s1 + $0x3c] sm:$0xf]
  %v53 = vunpack.c.l.b16 %v33
  %v54 = vunpack.c.l.b16 %v34
  %v55 = vpack.c.b16 %v54, %v53
  %v73 = vunpack.c.l.b16 %v35
  %v74 = vunpack.c.l.b16 %v36
  %v75 = vunpack.c.l.b16 %v37
  %v76 = vunpack.c.l.b16 %v38
  %v77 = vunpack.c.l.b16 %v39
  %v78 = vunpack.c.l.b16 %v40
  %v79 = vunpack.c.l.b16 %v41
  %v80 = vunpack.c.l.b16 %v42
  %v81 = vunpack.c.l.b16 %v43
  %v82 = vunpack.c.l.b16 %v44
  %v83 = vunpack.c.l.b16 %v45
  %v84 = vunpack.c.l.b16 %v46
  %v85 = vunpack.c.l.b16 %v47
  %v86 = vunpack.c.l.b16 %v48
  %v87 = vunpack.c.l.b16 %v49
  %v88 = vunpack.c.l.b16 %v50
  %v89 = vpack.c.b16 %v74, %v73
  %v90 = vpack.c.b16 %v76, %v75
  %v91 = vpack.c.b16 %v78, %v77
  %v92 = vpack.c.b16 %v80, %v79
  %v93 = vpack.c.b16 %v82, %v81
  %v94 = vpack.c.b16 %v84, %v83
  %v95 = vpack.c.b16 %v86, %v85
  %v96 = vpack.c.b16 %v88, %v87
  %105 = vmatprep.subr.bf16.mxu0 0
  %106 = vmatpush1.bf16.msra.mxu0 %v89
  %107 = vmatprep.subr.bf16.mxu0 0
  %108 = vmatpush1.bf16.msra.mxu0 %v90
  %109 = vmatprep.subr.bf16.mxu0 0
  %110 = vmatpush1.bf16.msra.mxu0 %v91
  %111 = vmatprep.subr.bf16.mxu0 0
  %112 = vmatpush1.bf16.msra.mxu0 %v92
  %113 = vmatprep.subr.bf16.mxu0 0
  %114 = vmatpush1.bf16.msra.mxu0 %v93
  %115 = vmatprep.subr.bf16.mxu0 0
  %116 = vmatpush1.bf16.msra.mxu0 %v94
  %117 = vmatprep.subr.bf16.mxu0 0
  %118 = vmatpush1.bf16.msra.mxu0 %v95
  %119 = vmatprep.subr.bf16.mxu0 0
  %120 = vmatpush1.bf16.msra.mxu0 %v96
  %121 = vmatprep.subr.bf16.mxu0 0
  %122 = vmatpush1.bf16.msra.mxu0 0
  %123 = vmatprep.subr.bf16.mxu0 0
  %124 = vmatpush1.bf16.msra.mxu0 0
  %125 = vmatprep.subr.bf16.mxu0 0
  %126 = vmatpush1.bf16.msra.mxu0 0
  %127 = vmatprep.subr.bf16.mxu0 0
  %128 = vmatpush1.bf16.msra.mxu0 0
  %129 = vmatprep.subr.bf16.mxu0 0
  %130 = vmatpush1.bf16.msra.mxu0 0
  %131 = vmatprep.subr.bf16.mxu0 0
  %132 = vmatpush1.bf16.msra.mxu0 0
  %133 = vmatprep.subr.bf16.mxu0 0
  %134 = vmatpush1.bf16.msra.mxu0 0
  %135 = vmatprep.subr.bf16.mxu0 0
  %136 = vmatpush1.bf16.msra.mxu0 0
  %137 = vmatprep.mubr.bf16.mxu0 0
  %138 = vmatmul.mubr.bf16.gmra.mrb[0].mxu0 %v55
  %v139 = vpop.f32.mrb[0].mxu0
  %v140 = vadd.f32 0.0, %v139
  %v141 = vpop.f32.mrb[0].mxu0
  %v142 = vpop.f32.mrb[0].mxu0
  %v143 = vadd.f32 0.0, %v142
  %v144 = vpop.f32.mrb[0].mxu0
  %145 = vdwg.mxu0
  %v146 = vadd.f32 %v31, %v140
  %v147 = vadd.f32 %v32, %v143
  %vm148 = vcmask 261120
  %149 = vst.msk [vmem:[#allocation2] sm:$0xff] %vm148, %v146
  %150 = vst.msk [vmem:[#allocation2 + $0x8] sm:$0xff] %vm148, %v147
  // Predicated region
  $region30: #{decoder_forward.27} parent=0 // pred_check
    %p151 = pneg %p24
  $region31: #{decoder_forward.27} parent=0 // pred_check_branch
    %153 = sbr.rel (%p151) target = $region33
  $region32: #{decoder_forward.27} parent=0 // pred_region
    %v154 = vld [vmem:[#allocation2] sm:$0xff]
    %v155 = vld [vmem:[#allocation2 + $0x8] sm:$0xff]
    %v156 = vld [vmem:[%s2] sm:$0x1]
    %v158 = vlaneseq
    %v159 = vshrl.u32 %v158, 7
    %v160 = vsub.s32 0, %v159
    %v161 = vrot.slane %v156, %v160
    %v163 = vadd.f32 %v154, %v161
    %v164 = vadd.f32 %v155, %v161
    %v165 = vld [vmem:[%s3] sm:$0xff]
    %v166 = vld [vmem:[%s3 + $0x8] sm:$0xff]
    %v167 = vadd.f32 %v163, %v165
    %v168 = vadd.f32 %v164, %v166
    %v169 = vsel %vm148, %v167, 0.0
    %170 = vadd.xlane.f32.xlu0 %v169
    %v171 = vpop.xlane.xlu0 %170
    %v172 = vsel %vm148, %v168, 0.0
    %173 = vadd.xlane.f32.xlu0 %v172
    %v174 = vpop.xlane.xlu0 %173
    %v175 = vrcp.pop 32.0
    %v176 = vmul.f32 %v171, %v175
    %v177 = vmul.f32 %v174, %v175
    %v178 = vsub.f32 %v167, %v176
    %v179 = vsub.f32 %v168, %v177
    %v180 = vmul.f32 %v178, %v178
    %v181 = vmul.f32 %v179, %v179
    %v182 = vsel %vm148, %v180, 0.0
    %183 = vadd.xlane.f32.xlu0 %v182
    %v184 = vpop.xlane.xlu0 %183
    %v185 = vsel %vm148, %v181, 0.0
    %186 = vadd.xlane.f32.xlu0 %v185
    %v187 = vpop.xlane.xlu0 %186
    %v188 = vmul.f32 %v184, 0.032258064
    %v189 = vmul.f32 %v187, 0.032258064
    %v190 = vrsqrt.pop %v188
    %v191 = vmul.f32 %v188, %v190
    %vm192 = vcmp.eq.f32.partialorder %v188, inf
    %v193 = vsel %vm192, %v188, %v191
    %vm194 = vcmp.eq.f32.partialorder %v188, 0.0
    %v195 = vand.u32 %v188, 2147483648
    %v196 = vsel %vm194, %v195, %v193
    %v197 = vrsqrt.pop %v189
    %v198 = vmul.f32 %v189, %v197
    %vm199 = vcmp.eq.f32.partialorder %v189, inf
    %v200 = vsel %vm199, %v189, %v198
    %vm201 = vcmp.eq.f32.partialorder %v189, 0.0
    %v202 = vand.u32 %v189, 2147483648
    %v203 = vsel %vm201, %v202, %v200
    %v204 = vadd.f32 %v196, 1e-12
    %v205 = vadd.f32 %v203, 1e-12
    %v206 = vrcp.pop %v204
    %v207 = vmul.f32 %v178, %v206
    %v208 = vrcp.pop %v205
    %v209 = vmul.f32 %v179, %v208
    %v210 = vld [vmem:[%s4] sm:$0x1]
    %v212 = vlaneseq
    %v213 = vshrl.u32 %v212, 7
    %v214 = vsub.s32 0, %v213
    %v215 = vrot.slane %v210, %v214
    %v217 = vmul.f32 %v215, %v207
    %v218 = vmul.f32 %v215, %v209
    %v219 = vld [vmem:[%s5] sm:$0x1]
    %v221 = vlaneseq
    %v222 = vshrl.u32 %v221, 7
    %v223 = vsub.s32 0, %v222
    %v224 = vrot.slane %v219, %v223
    %v226 = vadd.f32 %v217, %v224
    %v227 = vadd.f32 %v218, %v224
    %228 = vst.msk [vmem:[%s6] sm:$0xff] %vm148, %v226
    %229 = vst.msk [vmem:[%s6 + $0x8] sm:$0xff] %vm148, %v227
  $region33: #{decoder_forward.27} parent=0 // pred_fallthru
    _
  // Predicated region
  $region34: #{decoder_forward.27} parent=0 // pred_check
    _
  $region35: #{decoder_forward.27} parent=0 // pred_check_branch
    %231 = sbr.rel (0) target = $region37
  $region36: #{decoder_forward.27} parent=0 // pred_region
    _
  $region37: #{decoder_forward.27} parent=0 // pred_fallthru
    _
  // Predicated region
  $region38: #{decoder_forward.27} parent=0 // pred_check
    _
  $region39: #{decoder_forward.27} parent=0 // pred_check_branch
    %233 = sbr.rel (0) target = $region41
  $region40: #{decoder_forward.27} parent=0 // pred_region
    _
  $region41: #{decoder_forward.27} parent=0 // pred_fallthru
    _

// kernel: decoder_forward.26
$region0: #{decoder_forward.26}
  #allocation0 [shape = 'u32[]', space=smem, size = 0x4, offset = 0x4, fixed_abs, tag = 'smem constant byte address 0x4 - core index']
  #allocation1 [shape = 'u32[144,128]{1,0:T(1,128)}', space=vmem, size = 0x12000, scoped, tag = 'internal scratch']
  #allocation2 [shape = 'f32[16,128]{1,0:T(8,128)}', space=vmem, size = 0x2000, scoped, tag = 'scratch operand']
  %s0 = inlined_call_operand.vmem [shape: bf16[16,32], index: 0, kind: input, shape index: {}]
  %s1 = inlined_call_operand.vmem [shape: bf16[32,128], index: 1, kind: input, shape index: {}]
  %s2 = inlined_call_operand.vmem [shape: f32[1,128], index: 2, kind: input, shape index: {}]
  %s3 = inlined_call_operand.vmem [shape: bf16[16,128], index: 3, kind: output, shape index: {}]
  %s4 = sld [smem:[#allocation0]]
  $region30: #{decoder_forward.26} parent=0
    _
  %s6 = ssub.s32 1, %s4
  %s7 = scalar_select 0, %s6, %s4
  // Predicated region
  $region2: #{decoder_forward.26} parent=0 // pred_check
    _
  $region3: #{decoder_forward.26} parent=0 // pred_check_branch
    %9 = sbr.rel (0) target = $region5
  $region4: #{decoder_forward.26} parent=0 // pred_region
    _
  $region5: #{decoder_forward.26} parent=0 // pred_fallthru
    _
  // Predicated region
  $region6: #{decoder_forward.26} parent=0 // pred_check
    _
  $region7: #{decoder_forward.26} parent=0 // pred_check_branch
    %11 = sbr.rel (0) target = $region9
  $region8: #{decoder_forward.26} parent=0 // pred_region
    _
  $region9: #{decoder_forward.26} parent=0 // pred_fallthru
    _
  // Predicated region
  $region10: #{decoder_forward.26} parent=0 // pred_check
    _
  $region11: #{decoder_forward.26} parent=0 // pred_check_branch
    %13 = sbr.rel (0) target = $region13
  $region12: #{decoder_forward.26} parent=0 // pred_region
    _
  $region13: #{decoder_forward.26} parent=0 // pred_fallthru
    _
  %p15 = scmp.eq.s32.totalorder 0, 0
  // Predicated region
  $region14: #{decoder_forward.26} parent=0 // pred_check
    %p16 = pneg %p15
  $region15: #{decoder_forward.26} parent=0 // pred_check_branch
    %18 = sbr.rel (%p16) target = $region17
  $region16: #{decoder_forward.26} parent=0 // pred_region
    %19 = vst [vmem:[#allocation2] sm:$0xff] 0.0
    %20 = vst [vmem:[#allocation2 + $0x8] sm:$0xff] 0.0
  $region17: #{decoder_forward.26} parent=0 // pred_fallthru
    _
  %v21 = vld [vmem:[#allocation2] sm:$0xff]
  %v22 = vld [vmem:[#allocation2 + $0x8] sm:$0xff]
  %v23 = vld [vmem:[%s0] sm:$0xf]
  %v24 = vld [vmem:[%s0 + $0x4] sm:$0xf]
  %v25 = vld [vmem:[%s1] sm:$0xf]
  %v26 = vld [vmem:[%s1 + $0x4] sm:$0xf]
  %v27 = vld [vmem:[%s1 + $0x8] sm:$0xf]
  %v28 = vld [vmem:[%s1 + $0xc] sm:$0xf]
  %v31 = vunpack.c.l.b16 %v23
  %v32 = vunpack.c.l.b16 %v24
  %v33 = vpack.c.b16 %v32, %v31
  %v38 = vunpack.c.l.b16 %v25
  %v39 = vunpack.c.l.b16 %v26
  %v40 = vunpack.c.l.b16 %v27
  %v41 = vunpack.c.l.b16 %v28
  %v42 = vpack.c.b16 %v39, %v38
  %v43 = vpack.c.b16 %v41, %v40
  %vm46 = vcmask 261120
  %v48 = vsel %vm46, %v33, 0
  %50 = vmatprep.subr.bf16.mxu0 0
  %51 = vmatpush1.bf16.msra.mxu0 %v42
  %52 = vmatprep.subr.bf16.mxu0 0
  %53 = vmatpush1.bf16.msra.mxu0 %v43
  %54 = vmatprep.subr.bf16.mxu0 0
  %55 = vmatpush1.bf16.msra.mxu0 0
  %56 = vmatprep.subr.bf16.mxu0 0
  %57 = vmatpush1.bf16.msra.mxu0 0
  %58 = vmatprep.subr.bf16.mxu0 0
  %59 = vmatpush1.bf16.msra.mxu0 0
  %60 = vmatprep.subr.bf16.mxu0 0
  %61 = vmatpush1.bf16.msra.mxu0 0
  %62 = vmatprep.subr.bf16.mxu0 0
  %63 = vmatpush1.bf16.msra.mxu0 0
  %64 = vmatprep.subr.bf16.mxu0 0
  %65 = vmatpush1.bf16.msra.mxu0 0
  %66 = vmatprep.subr.bf16.mxu0 0
  %67 = vmatpush1.bf16.msra.mxu0 0
  %68 = vmatprep.subr.bf16.mxu0 0
  %69 = vmatpush1.bf16.msra.mxu0 0
  %70 = vmatprep.subr.bf16.mxu0 0
  %71 = vmatpush1.bf16.msra.mxu0 0
  %72 = vmatprep.subr.bf16.mxu0 0
  %73 = vmatpush1.bf16.msra.mxu0 0
  %74 = vmatprep.subr.bf16.mxu0 0
  %75 = vmatpush1.bf16.msra.mxu0 0
  %76 = vmatprep.subr.bf16.mxu0 0
  %77 = vmatpush1.bf16.msra.mxu0 0
  %78 = vmatprep.subr.bf16.mxu0 0
  %79 = vmatpush1.bf16.msra.mxu0 0
  %80 = vmatprep.subr.bf16.mxu0 0
  %81 = vmatpush1.bf16.msra.mxu0 0
  %82 = vmatprep.mubr.bf16.mxu0 0
  %83 = vmatmul.mubr.bf16.gmra.mrb[0].mxu0 %v48
  %v84 = vpop.f32.mrb[0].mxu0
  %v85 = vadd.f32 0.0, %v84
  %v86 = vpop.f32.mrb[0].mxu0
  %v87 = vpop.f32.mrb[0].mxu0
  %v88 = vadd.f32 0.0, %v87
  %v89 = vpop.f32.mrb[0].mxu0
  %90 = vdwg.mxu0
  %v91 = vadd.f32 %v21, %v85
  %v92 = vadd.f32 %v22, %v88
  %93 = vst [vmem:[#allocation2] sm:$0xff] %v91
  %94 = vst [vmem:[#allocation2 + $0x8] sm:$0xff] %v92
  // Predicated region
  $region18: #{decoder_forward.26} parent=0 // pred_check
    %p95 = pneg %p15
  $region19: #{decoder_forward.26} parent=0 // pred_check_branch
    %97 = sbr.rel (%p95) target = $region21
  $region20: #{decoder_forward.26} parent=0 // pred_region
    %v98 = vld [vmem:[#allocation2] sm:$0xff]
    %v99 = vld [vmem:[#allocation2 + $0x8] sm:$0xff]
    %v100 = vld [vmem:[%s2] sm:$0x1]
    %v102 = vlaneseq
    %v103 = vshrl.u32 %v102, 7
    %v104 = vsub.s32 0, %v103
    %v105 = vrot.slane %v100, %v104
    %v107 = vadd.f32 %v98, %v105
    %v108 = vadd.f32 %v99, %v105
    %v109 = vmax.f32 %v107, 0.0
    %v110 = vmax.f32 %v108, 0.0
    %v111 = vpack.c.bf16 %v110, %v109
    %v113 = vunpack.c.l.b16 %v111
    %v114 = vunpack.c.h.b16 %v111
    %v115 = vpack.c.b16 %v113, %v113
    %v116 = vpack.c.b16 %v114, %v114
    %119 = vst [vmem:[%s3] sm:$0xf] %v115
    %120 = vst [vmem:[%s3 + $0x4] sm:$0xf] %v116
  $region21: #{decoder_forward.26} parent=0 // pred_fallthru
    _
  // Predicated region
  $region22: #{decoder_forward.26} parent=0 // pred_check
    _
  $region23: #{decoder_forward.26} parent=0 // pred_check_branch
    %122 = sbr.rel (0) target = $region25
  $region24: #{decoder_forward.26} parent=0 // pred_region
    _
  $region25: #{decoder_forward.26} parent=0 // pred_fallthru
    _
  // Predicated region
  $region26: #{decoder_forward.26} parent=0 // pred_check
    _
  $region27: #{decoder_forward.26} parent=0 // pred_check_branch
    %124 = sbr.rel (0) target = $region29
  $region28: #{decoder_forward.26} parent=0 // pred_region
    _
  $region29: #{decoder_forward.26} parent=0 // pred_fallthru
    _

</llo_original>
